<compile_context>
chip_gen: v7x
topology: tpu7x:2x2x1
jax: 0.10.0
libtpu: 0.0.40
codegen_flags: <defaults>
</compile_context>

<pallas_src>
import functools

import jax
import jax.numpy as jnp
from jax.experimental import pallas as pl
from jax.experimental.pallas import tpu as pltpu

HIDDEN = 100
HIDDEN_PAD = 128          # lane-aligned hidden width (exact zero padding)
SIZE = 12
IN_FEATURES = (SIZE * 3 - 1) * 10  # 350
OUT_FEATURES = 10

DEFAULT_TILE_B = 4096     # rows per grid step; multiple of 8
MAX_TILE_B = 8192         # keeps the double-buffered x tile comfortably in VMEM


def _round_up(n, m):
    return ((n + m - 1) // m) * m


def mlp_kernel(x_ref,
               w1_ref, b1_ref,
               w2_ref, b2_ref,
               w3_ref, b3_ref,
               w4_ref, b4_ref,
               o_ref):
    x = x_ref[...]
    w_dt = w1_ref.dtype  # f32 by default, bf16 under the optional flag

    # Layer 1: Linear + ReLU
    h = jnp.dot(x.astype(w_dt), w1_ref[...],
                preferred_element_type=jnp.float32) + b1_ref[...]
    h = jnp.maximum(h, 0.0)

    # Layer 2: Linear + Tanh (tanh runs on the EUP slot)
    h = jnp.dot(h.astype(w_dt), w2_ref[...],
                preferred_element_type=jnp.float32) + b2_ref[...]
    h = jnp.tanh(h)

    # Layer 3: Linear + ReLU
    h = jnp.dot(h.astype(w_dt), w3_ref[...],
                preferred_element_type=jnp.float32) + b3_ref[...]
    h = jnp.maximum(h, 0.0)

    # Layer 4: Linear + Softmax along features (PyTorch Softmax(dim=1))
    logits = jnp.dot(h.astype(w_dt), w4_ref[...],
                     preferred_element_type=jnp.float32) + b4_ref[...]
    m = jnp.max(logits, axis=-1, keepdims=True)
    e = jnp.exp(logits - m)
    denom = jnp.sum(e, axis=-1, keepdims=True)
    # exact reciprocal keeps the 1e-5 allclose check; approx=True would move it
    # fully onto the otherwise-idle EUP slot if the tolerance can be relaxed.
    o_ref[...] = (e * pl.reciprocal(denom, approx=False)).astype(o_ref.dtype)


def pad_params(params):
    """Zero-pad the hidden dimension 100 -> 128 (numerically exact)."""
    (w1, b1, w2, b2, w3, b3, w4, b4) = params
    if w1.shape[1] == HIDDEN_PAD:
        return params  # already padded
    ph = HIDDEN_PAD - HIDDEN
    w1 = jnp.pad(w1, ((0, 0), (0, ph)))
    b1 = jnp.pad(b1, ((0, 0), (0, ph)))
    w2 = jnp.pad(w2, ((0, ph), (0, ph)))
    b2 = jnp.pad(b2, ((0, 0), (0, ph)))
    w3 = jnp.pad(w3, ((0, ph), (0, ph)))
    b3 = jnp.pad(b3, ((0, 0), (0, ph)))
    w4 = jnp.pad(w4, ((0, ph), (0, 0)))
    return (w1, b1, w2, b2, w3, b3, w4, b4)


def net_forward(x, params, tile_b=DEFAULT_TILE_B, use_bf16=False):
    # Accept raw (100-wide) or pre-padded (128-wide) params; prefer pre-padding
    # once outside the hot path.
    params = pad_params(params)
    (w1, b1, w2, b2, w3, b3, w4, b4) = params

    B = x.shape[0]
    assert x.shape[1] == IN_FEATURES

    if use_bf16:
        # Optional fast path (v6e/v7x): bf16 operands, f32 accumulate.
        # Breaks the 1e-5 allclose tolerance -> opt-in only.
        x = x.astype(jnp.bfloat16)
        w1, w2, w3, w4 = (w.astype(jnp.bfloat16) for w in (w1, w2, w3, w4))

    # Tile rows over the batch. TB is a multiple of 8 (sublane), capped so the
    # grid always has >= 2 steps (keeps both v7x TensorCores busy) and so the
    # double-buffered x tile stays well inside VMEM. No HBM padding of x: the
    # trailing partial block's out-of-bounds rows are masked on writeback.
    TB = max(8, min(int(tile_b), MAX_TILE_B, _round_up(pl.cdiv(B, 2), 8)))
    TB = _round_up(TB, 8)
    grid = (pl.cdiv(B, TB),)

    weights = (w1, b1, w2, b2, w3, b3, w4, b4)
    param_bytes = sum(int(p.size) * p.dtype.itemsize for p in weights)

    # Scoped-VMEM budget: double-buffered x tile + double-buffered out tile +
    # resident params (counted twice to be safe) + headroom.
    vmem_needed = (2 * TB * IN_FEATURES * x.dtype.itemsize
                   + 2 * TB * OUT_FEATURES * 4
                   + 2 * param_bytes
                   + (2 << 20))
    vmem_limit = max(vmem_needed, 16 << 20)

    flops = 2 * B * (IN_FEATURES * HIDDEN_PAD
                     + 2 * HIDDEN_PAD * HIDDEN_PAD
                     + HIDDEN_PAD * OUT_FEATURES)
    transcendentals = B * (HIDDEN_PAD + OUT_FEATURES)  # tanh + exp
    bytes_accessed = (B * (IN_FEATURES * x.dtype.itemsize + OUT_FEATURES * 4)
                      + param_bytes)
    cost = pl.CostEstimate(flops=flops,
                           transcendentals=transcendentals,
                           bytes_accessed=bytes_accessed)

    # Weights/biases: constant block index -> VMEM-resident across grid steps.
    const = lambda shape: pl.BlockSpec(shape, lambda i: (0,) * len(shape))

    out = pl.pallas_call(
        mlp_kernel,
        out_shape=jax.ShapeDtypeStruct((B, OUT_FEATURES), jnp.float32),
        grid=grid,
        in_specs=[
            pl.BlockSpec((TB, IN_FEATURES), lambda i: (i, 0)),
            const(w1.shape), const(b1.shape),
            const(w2.shape), const(b2.shape),
            const(w3.shape), const(b3.shape),
            const(w4.shape), const(b4.shape),
        ],
        out_specs=pl.BlockSpec((TB, OUT_FEATURES), lambda i: (i, 0)),
        compiler_params=pltpu.CompilerParams(
            # batch axis is embarrassingly parallel -> both TCs on v7x
            dimension_semantics=("parallel",),
            vmem_limit_bytes=int(vmem_limit),
        ),
        cost_estimate=cost,
    )(x, w1, b1, w2, b2, w3, b3, w4, b4)

    return out


def init_params(key):
    """Deterministic PyTorch-Linear-style init: U(-1/sqrt(fan_in), 1/sqrt(fan_in))."""
    dims = [(IN_FEATURES, HIDDEN), (HIDDEN, HIDDEN), (HIDDEN, HIDDEN), (HIDDEN, OUT_FEATURES)]
    params = []
    for (fan_in, fan_out) in dims:
        key, kw, kb = jax.random.split(key, 3)
        bound = 1.0 / jnp.sqrt(fan_in)
        w = jax.random.uniform(kw, (fan_in, fan_out), jnp.float32, -bound, bound)
        b = jax.random.uniform(kb, (1, fan_out), jnp.float32, -bound, bound)
        params += [w, b]
    return tuple(params)


def reference_forward(x, params):
    (w1, b1, w2, b2, w3, b3, w4, b4) = params
    h = jnp.maximum(x @ w1 + b1, 0.0)
    h = jnp.tanh(h @ w2 + b2)
    h = jnp.maximum(h @ w3 + b3, 0.0)
    logits = h @ w4 + b4
    return jax.nn.softmax(logits, axis=1)


if __name__ == "__main__":
    key = jax.random.PRNGKey(0)
    key, kx = jax.random.split(key)

    # Small test shapes consistent with the module (IN_FEATURES = 350).
    B = 200
    x = jax.random.normal(kx, (B, IN_FEATURES), dtype=jnp.float32)
    params = init_params(key)
    padded_params = pad_params(params)   # one-time param prep (hidden 100 -> 128)
    ref = reference_forward(x, params)

    # Multi-step grid with a partial trailing block (200 rows, TB=64 -> 4 steps,
    # last step has 8 valid rows) to exercise the masked-boundary path.
    out = jax.block_until_ready(net_forward(x, padded_params, tile_b=64))
    assert out.shape == (B, OUT_FEATURES)
    assert jnp.allclose(out, ref, atol=1e-5, rtol=1e-5)
    assert jnp.allclose(jnp.sum(out, axis=1), jnp.ones((B,)), atol=1e-5)

    # Default (large-tile) production path: TB is capped to give >= 2 grid steps.
    out2 = jax.block_until_ready(net_forward(x, padded_params))
    assert jnp.allclose(out2, ref, atol=1e-5, rtol=1e-5)

    print("KERNEL_OK")
</pallas_src>

<mosaic_0001>
module attributes {stable_mosaic.version = 11 : i64} {
  func.func @mlp_kernel(%arg0: i32, %arg1: memref<64x350xf32, #tpu.memory_space<vmem>>, %arg2: memref<350x128xf32, #tpu.memory_space<vmem>>, %arg3: memref<1x128xf32, #tpu.memory_space<vmem>>, %arg4: memref<128x128xf32, #tpu.memory_space<vmem>>, %arg5: memref<1x128xf32, #tpu.memory_space<vmem>>, %arg6: memref<128x128xf32, #tpu.memory_space<vmem>>, %arg7: memref<1x128xf32, #tpu.memory_space<vmem>>, %arg8: memref<128x10xf32, #tpu.memory_space<vmem>>, %arg9: memref<1x10xf32, #tpu.memory_space<vmem>>, %arg10: memref<64x10xf32, #tpu.memory_space<vmem>>) attributes {dimension_semantics = [#tpu.dimension_semantics<parallel>], iteration_bounds = array<i64: 4>, scalar_prefetch = 0 : i64, scratch_operands = 0 : i64, tpu.core_type = #tpu.core_type<tc>, window_params = [{transform_indices = @transform_0, window_bounds = array<i64: 64, 350>}, {pipeline_mode = #tpu.pipeline_mode<synchronous>, transform_indices = @transform_1, window_bounds = array<i64: 350, 128>}, {pipeline_mode = #tpu.pipeline_mode<synchronous>, transform_indices = @transform_2, window_bounds = array<i64: 1, 128>}, {pipeline_mode = #tpu.pipeline_mode<synchronous>, transform_indices = @transform_3, window_bounds = array<i64: 128, 128>}, {pipeline_mode = #tpu.pipeline_mode<synchronous>, transform_indices = @transform_4, window_bounds = array<i64: 1, 128>}, {pipeline_mode = #tpu.pipeline_mode<synchronous>, transform_indices = @transform_5, window_bounds = array<i64: 128, 128>}, {pipeline_mode = #tpu.pipeline_mode<synchronous>, transform_indices = @transform_6, window_bounds = array<i64: 1, 128>}, {pipeline_mode = #tpu.pipeline_mode<synchronous>, transform_indices = @transform_7, window_bounds = array<i64: 128, 10>}, {pipeline_mode = #tpu.pipeline_mode<synchronous>, transform_indices = @transform_8, window_bounds = array<i64: 1, 10>}, {transform_indices = @transform_9, window_bounds = array<i64: 64, 10>}]} {
    %c0 = arith.constant 0 : index
    %c0_0 = arith.constant 0 : index
    %0 = vector.load %arg1[%c0, %c0_0] : memref<64x350xf32, #tpu.memory_space<vmem>>, vector<64x350xf32>
    %c0_1 = arith.constant 0 : index
    %c0_2 = arith.constant 0 : index
    %1 = vector.load %arg2[%c0_1, %c0_2] : memref<350x128xf32, #tpu.memory_space<vmem>>, vector<350x128xf32>
    %cst = arith.constant dense<0.000000e+00> : vector<64x128xf32>
    %2 = tpu.matmul %0, %1, %cst {dimension_numbers = #tpu.dot_dimension_numbers<[1], [0], [0], [1], [0, 0, 1, 1], [], []>} : vector<64x350xf32>, vector<350x128xf32>, vector<64x128xf32> -> vector<64x128xf32>
    %c0_3 = arith.constant 0 : index
    %c0_4 = arith.constant 0 : index
    %3 = vector.load %arg3[%c0_3, %c0_4] : memref<1x128xf32, #tpu.memory_space<vmem>>, vector<1x128xf32>
    %4 = vector.broadcast %3 : vector<1x128xf32> to vector<64x128xf32>
    %5 = arith.addf %2, %4 : vector<64x128xf32>
    %cst_5 = arith.constant 0.000000e+00 : f32
    %6 = vector.broadcast %cst_5 : f32 to vector<64x128xf32>
    %7 = arith.maximumf %5, %6 : vector<64x128xf32>
    %c0_6 = arith.constant 0 : index
    %c0_7 = arith.constant 0 : index
    %8 = vector.load %arg4[%c0_6, %c0_7] : memref<128x128xf32, #tpu.memory_space<vmem>>, vector<128x128xf32>
    %cst_8 = arith.constant dense<0.000000e+00> : vector<64x128xf32>
    %9 = tpu.matmul %7, %8, %cst_8 {dimension_numbers = #tpu.dot_dimension_numbers<[1], [0], [0], [1], [0, 0, 1, 1], [], []>} : vector<64x128xf32>, vector<128x128xf32>, vector<64x128xf32> -> vector<64x128xf32>
    %c0_9 = arith.constant 0 : index
    %c0_10 = arith.constant 0 : index
    %10 = vector.load %arg5[%c0_9, %c0_10] : memref<1x128xf32, #tpu.memory_space<vmem>>, vector<1x128xf32>
    %11 = vector.broadcast %10 : vector<1x128xf32> to vector<64x128xf32>
    %12 = arith.addf %9, %11 : vector<64x128xf32>
    %13 = math.tanh %12 : vector<64x128xf32>
    %c0_11 = arith.constant 0 : index
    %c0_12 = arith.constant 0 : index
    %14 = vector.load %arg6[%c0_11, %c0_12] : memref<128x128xf32, #tpu.memory_space<vmem>>, vector<128x128xf32>
    %cst_13 = arith.constant dense<0.000000e+00> : vector<64x128xf32>
    %15 = tpu.matmul %13, %14, %cst_13 {dimension_numbers = #tpu.dot_dimension_numbers<[1], [0], [0], [1], [0, 0, 1, 1], [], []>} : vector<64x128xf32>, vector<128x128xf32>, vector<64x128xf32> -> vector<64x128xf32>
    %c0_14 = arith.constant 0 : index
    %c0_15 = arith.constant 0 : index
    %16 = vector.load %arg7[%c0_14, %c0_15] : memref<1x128xf32, #tpu.memory_space<vmem>>, vector<1x128xf32>
    %17 = vector.broadcast %16 : vector<1x128xf32> to vector<64x128xf32>
    %18 = arith.addf %15, %17 : vector<64x128xf32>
    %cst_16 = arith.constant 0.000000e+00 : f32
    %19 = vector.broadcast %cst_16 : f32 to vector<64x128xf32>
    %20 = arith.maximumf %18, %19 : vector<64x128xf32>
    %c0_17 = arith.constant 0 : index
    %c0_18 = arith.constant 0 : index
    %21 = vector.load %arg8[%c0_17, %c0_18] : memref<128x10xf32, #tpu.memory_space<vmem>>, vector<128x10xf32>
    %cst_19 = arith.constant dense<0.000000e+00> : vector<64x10xf32>
    %22 = tpu.matmul %20, %21, %cst_19 {dimension_numbers = #tpu.dot_dimension_numbers<[1], [0], [0], [1], [0, 0, 1, 1], [], []>} : vector<64x128xf32>, vector<128x10xf32>, vector<64x10xf32> -> vector<64x10xf32>
    %c0_20 = arith.constant 0 : index
    %c0_21 = arith.constant 0 : index
    %23 = vector.load %arg9[%c0_20, %c0_21] : memref<1x10xf32, #tpu.memory_space<vmem>>, vector<1x10xf32>
    %24 = vector.broadcast %23 : vector<1x10xf32> to vector<64x10xf32>
    %25 = arith.addf %22, %24 : vector<64x10xf32>
    %cst_22 = arith.constant dense<0xFF800000> : vector<64xf32>
    %26 = vector.multi_reduction <maximumf>, %25, %cst_22 [1] : vector<64x10xf32> to vector<64xf32>
    %27 = vector.shape_cast %26 : vector<64xf32> to vector<64x1xf32>
    %28 = vector.broadcast %27 : vector<64x1xf32> to vector<64x10xf32>
    %29 = arith.subf %25, %28 : vector<64x10xf32>
    %30 = math.exp %29 : vector<64x10xf32>
    %cst_23 = arith.constant dense<0.000000e+00> : vector<64xf32>
    %31 = vector.multi_reduction <add>, %30, %cst_23 [1] : vector<64x10xf32> to vector<64xf32>
    %32 = vector.shape_cast %31 : vector<64xf32> to vector<64x1xf32>
    %33 = tpu.reciprocal %32 : vector<64x1xf32> -> vector<64x1xf32>
    %34 = vector.broadcast %33 : vector<64x1xf32> to vector<64x10xf32>
    %35 = arith.mulf %30, %34 : vector<64x10xf32>
    %c0_24 = arith.constant 0 : index
    %c0_25 = arith.constant 0 : index
    %36 = vector.load %arg10[%c0_24, %c0_25] : memref<64x10xf32, #tpu.memory_space<vmem>>, vector<64x10xf32>
    tpu.vector_store %arg10[%c0_24, %c0_25], %35 {strides = array<i32>} : memref<64x10xf32, #tpu.memory_space<vmem>>, vector<64x10xf32>,
    return
  }
  func.func @transform_0(%arg0: i32) -> (i32, i32) {
    %c0_i32 = arith.constant 0 : i32
    %c0_i32_0 = arith.constant 0 : i32
    return %arg0, %c0_i32 : i32, i32
  }
  func.func @transform_1(%arg0: i32) -> (i32, i32) {
    %c0_i32 = arith.constant 0 : i32
    %c0_i32_0 = arith.constant 0 : i32
    %c0_i32_1 = arith.constant 0 : i32
    return %c0_i32, %c0_i32_0 : i32, i32
  }
  func.func @transform_2(%arg0: i32) -> (i32, i32) {
    %c0_i32 = arith.constant 0 : i32
    %c0_i32_0 = arith.constant 0 : i32
    %c0_i32_1 = arith.constant 0 : i32
    return %c0_i32, %c0_i32_0 : i32, i32
  }
  func.func @transform_3(%arg0: i32) -> (i32, i32) {
    %c0_i32 = arith.constant 0 : i32
    %c0_i32_0 = arith.constant 0 : i32
    %c0_i32_1 = arith.constant 0 : i32
    return %c0_i32, %c0_i32_0 : i32, i32
  }
  func.func @transform_4(%arg0: i32) -> (i32, i32) {
    %c0_i32 = arith.constant 0 : i32
    %c0_i32_0 = arith.constant 0 : i32
    %c0_i32_1 = arith.constant 0 : i32
    return %c0_i32, %c0_i32_0 : i32, i32
  }
  func.func @transform_5(%arg0: i32) -> (i32, i32) {
    %c0_i32 = arith.constant 0 : i32
    %c0_i32_0 = arith.constant 0 : i32
    %c0_i32_1 = arith.constant 0 : i32
    return %c0_i32, %c0_i32_0 : i32, i32
  }
  func.func @transform_6(%arg0: i32) -> (i32, i32) {
    %c0_i32 = arith.constant 0 : i32
    %c0_i32_0 = arith.constant 0 : i32
    %c0_i32_1 = arith.constant 0 : i32
    return %c0_i32, %c0_i32_0 : i32, i32
  }
  func.func @transform_7(%arg0: i32) -> (i32, i32) {
    %c0_i32 = arith.constant 0 : i32
    %c0_i32_0 = arith.constant 0 : i32
    %c0_i32_1 = arith.constant 0 : i32
    return %c0_i32, %c0_i32_0 : i32, i32
  }
  func.func @transform_8(%arg0: i32) -> (i32, i32) {
    %c0_i32 = arith.constant 0 : i32
    %c0_i32_0 = arith.constant 0 : i32
    %c0_i32_1 = arith.constant 0 : i32
    return %c0_i32, %c0_i32_0 : i32, i32
  }
  func.func @transform_9(%arg0: i32) -> (i32, i32) {
    %c0_i32 = arith.constant 0 : i32
    %c0_i32_0 = arith.constant 0 : i32
    return %arg0, %c0_i32 : i32, i32
  }
}

</mosaic_0001>

<llo_original>
// kernel: tpu_custom_call.1
$region0: #{tpu_custom_call.1}
  #allocation0 [shape = 'u32[]', space=smem, size = 0x4, offset = 0x4, fixed_abs, tag = 'smem constant byte address 0x4 - core index']
  #allocation1 [shape = 'u32[144,128]{1,0:T(1,128)}', space=vmem, size = 0x12000, scoped, tag = 'internal scratch']
  %s0 = inlined_call_operand.hbm [shape: f32[200,350], index: 0, kind: input, shape index: {}]
  %s1 = inlined_call_operand.hbm [shape: f32[350,128], index: 1, kind: input, shape index: {}]
  %s2 = inlined_call_operand.vmem [shape: f32[1,128], index: 2, kind: input, shape index: {}]
  %s3 = inlined_call_operand.vmem [shape: f32[128,128], index: 3, kind: input, shape index: {}]
  %s4 = inlined_call_operand.vmem [shape: f32[1,128], index: 4, kind: input, shape index: {}]
  %s5 = inlined_call_operand.hbm [shape: f32[128,128], index: 5, kind: input, shape index: {}]
  %s6 = inlined_call_operand.vmem [shape: f32[1,128], index: 6, kind: input, shape index: {}]
  %s7 = inlined_call_operand.vmem [shape: f32[128,10], index: 7, kind: input, shape index: {}]
  %s8 = inlined_call_operand.vmem [shape: f32[1,10], index: 8, kind: input, shape index: {}]
  %s9 = inlined_call_operand.vmem [shape: f32[200,10], index: 9, kind: output, shape index: {}]
  %s10 = sld [smem:[#allocation0]]
  $region129: #{tpu_custom_call.1} parent=0
    _
  %s12 = ssub.s32 1, %s10
  %s13 = scalar_select 0, %s12, %s10
  $region1: #{tpu_custom_call.1} parent=0
    #allocation2 [shape = 'u8[196608]{0}', space=vmem, size = 0x30000, scoped, tag = 'input window, operand 0']
    #allocation3 [shape = 's32[2]{0}', space=sflag, size = 0x8, scoped, tag = 'scoped memory for tpu_custom_call.1']
    #allocation4 [shape = 'u8[180224]{0}', space=vmem, size = 0x2c000, scoped, tag = 'input window, operand 1, single buffered']
    #allocation5 [shape = 's32[1]{0}', space=sflag, size = 0x4, scoped, tag = 'scoped memory for tpu_custom_call.1']
    #allocation6 [shape = 'u8[65536]{0}', space=vmem, size = 0x10000, scoped, tag = 'input window, operand 5, single buffered']
    #allocation7 [shape = 'u8[65536]{0}', space=vmem, size = 0x10000, scoped, tag = 'output window, operand 0']
    %14 = vsyncpa [#allocation3], 0
    %s15 = scalar_lea.sflag [#allocation3], 1
    %16 = vsyncpa %s15, 0
    %17 = vsyncpa [#allocation5], 0
    loop: start=0, step=1, limit=6
    $region2: #{tpu_custom_call.1} parent=1 // loop_pre_header
      _
    $region3: #{tpu_custom_call.1} parent=1 // loop_header
      %s19 = sphi 0, %s23
      %p20 = scmp.ge.s32.totalorder %s19, 6
      %s29 = sphi 0, %s31
      %s32 = sphi 0, %s29
      %s33 = sphi 0, %s32
      %s49 = sphi 0, %s33
      %s53 = sphi 0, %s53
      %s55 = sphi 0, %s53
      %s56 = sphi 0, %s55
      %s70 = sphi 0, %s56
      %s74 = sphi 0, %s74
      %s76 = sphi 0, %s74
      %s77 = sphi 0, %s76
      %s91 = sphi 0, %s77
      %s95 = sphi 0, %s95
      %s97 = sphi 0, %s95
      %s98 = sphi 0, %s97
      %s112 = sphi 0, %s98
      %s116 = sphi 0, %s116
      %s118 = sphi 0, %s116
      %s119 = sphi 0, %s118
      %s133 = sphi 0, %s119
      %s137 = sphi 0, %s137
      %s139 = sphi 0, %s137
      %s140 = sphi 0, %s139
      %s154 = sphi 0, %s140
      %s158 = sphi 0, %s158
      %s160 = sphi 0, %s158
      %s161 = sphi 0, %s160
      %s175 = sphi 0, %s161
      %s179 = sphi 0, %s179
      %s181 = sphi 0, %s179
      %s182 = sphi 0, %s181
      %s196 = sphi 0, %s182
      %s200 = sphi 0, %s200
      %s202 = sphi 0, %s200
      %s203 = sphi 0, %s202
      %s217 = sphi 0, %s203
      %s223 = sphi 0, %s225
      %s226 = sphi 0, %s223
      %s227 = sphi 0, %s226
      %s243 = sphi 0, %s227
    $region4: #{tpu_custom_call.1} parent=1 // loop_header_branch
      %22 = sbr.rel (%p20) target = $region8
    $region5: #{tpu_custom_call.1} parent=1 // loop_body
      %s24 = ssub.s32 %s19, 1
      %s25 = ssub.s32 %s19, 2
      %s26 = sadd.s32 %s19, 1
      %s27 = ssub.s32 %s19, %s26
      %p28 = scmp.eq.s32.totalorder %s27, 0
      %s30 = sadd.s32 %s29, 1
      %s31 = scalar_select %p28, %s29, %s30
      %p34 = pneg %p28
      %p35 = scmp.eq.s32.totalorder %s19, 3
      %p36 = por %p34, %p35
      %p37 = scmp.ne.s32.totalorder %s29, %s32
      %p38 = scmp.eq.s32.totalorder %s19, 0
      %p39 = por %p37, %p38
      %p40 = scmp.ne.s32.totalorder %s29, %s32
      %p41 = scmp.eq.s32.totalorder %s24, 3
      %p42 = por %p40, %p41
      %p43 = scmp.ne.s32.totalorder %s32, %s33
      %p44 = scmp.eq.s32.totalorder %s24, 0
      %p45 = por %p43, %p44
      %p46 = scmp.ne.s32.totalorder %s32, %s33
      %p47 = scmp.eq.s32.totalorder %s25, 3
      %p48 = por %p46, %p47
      %p50 = scmp.ne.s32.totalorder %s33, %s49
      %p51 = scmp.eq.s32.totalorder %s25, 0
      %p52 = por %p50, %p51
      %s54 = sadd.s32 %s53, 1
      %p57 = scmp.eq.s32.totalorder %s19, 3
      %p58 = scmp.ne.s32.totalorder %s53, %s55
      %p59 = scmp.eq.s32.totalorder %s19, 0
      %p60 = por %p58, %p59
      %p61 = scmp.ne.s32.totalorder %s53, %s55
      %p62 = scmp.eq.s32.totalorder %s24, 3
      %p63 = por %p61, %p62
      %p64 = scmp.ne.s32.totalorder %s55, %s56
      %p65 = scmp.eq.s32.totalorder %s24, 0
      %p66 = por %p64, %p65
      %p67 = scmp.ne.s32.totalorder %s55, %s56
      %p68 = scmp.eq.s32.totalorder %s25, 3
      %p69 = por %p67, %p68
      %p71 = scmp.ne.s32.totalorder %s56, %s70
      %p72 = scmp.eq.s32.totalorder %s25, 0
      %p73 = por %p71, %p72
      %s75 = sadd.s32 %s74, 1
      %p78 = scmp.eq.s32.totalorder %s19, 3
      %p79 = scmp.ne.s32.totalorder %s74, %s76
      %p80 = scmp.eq.s32.totalorder %s19, 0
      %p81 = por %p79, %p80
      %p82 = scmp.ne.s32.totalorder %s74, %s76
      %p83 = scmp.eq.s32.totalorder %s24, 3
      %p84 = por %p82, %p83
      %p85 = scmp.ne.s32.totalorder %s76, %s77
      %p86 = scmp.eq.s32.totalorder %s24, 0
      %p87 = por %p85, %p86
      %p88 = scmp.ne.s32.totalorder %s76, %s77
      %p89 = scmp.eq.s32.totalorder %s25, 3
      %p90 = por %p88, %p89
      %p92 = scmp.ne.s32.totalorder %s77, %s91
      %p93 = scmp.eq.s32.totalorder %s25, 0
      %p94 = por %p92, %p93
      %s96 = sadd.s32 %s95, 1
      %p99 = scmp.eq.s32.totalorder %s19, 3
      %p100 = scmp.ne.s32.totalorder %s95, %s97
      %p101 = scmp.eq.s32.totalorder %s19, 0
      %p102 = por %p100, %p101
      %p103 = scmp.ne.s32.totalorder %s95, %s97
      %p104 = scmp.eq.s32.totalorder %s24, 3
      %p105 = por %p103, %p104
      %p106 = scmp.ne.s32.totalorder %s97, %s98
      %p107 = scmp.eq.s32.totalorder %s24, 0
      %p108 = por %p106, %p107
      %p109 = scmp.ne.s32.totalorder %s97, %s98
      %p110 = scmp.eq.s32.totalorder %s25, 3
      %p111 = por %p109, %p110
      %p113 = scmp.ne.s32.totalorder %s98, %s112
      %p114 = scmp.eq.s32.totalorder %s25, 0
      %p115 = por %p113, %p114
      %s117 = sadd.s32 %s116, 1
      %p120 = scmp.eq.s32.totalorder %s19, 3
      %p121 = scmp.ne.s32.totalorder %s116, %s118
      %p122 = scmp.eq.s32.totalorder %s19, 0
      %p123 = por %p121, %p122
      %p124 = scmp.ne.s32.totalorder %s116, %s118
      %p125 = scmp.eq.s32.totalorder %s24, 3
      %p126 = por %p124, %p125
      %p127 = scmp.ne.s32.totalorder %s118, %s119
      %p128 = scmp.eq.s32.totalorder %s24, 0
      %p129 = por %p127, %p128
      %p130 = scmp.ne.s32.totalorder %s118, %s119
      %p131 = scmp.eq.s32.totalorder %s25, 3
      %p132 = por %p130, %p131
      %p134 = scmp.ne.s32.totalorder %s119, %s133
      %p135 = scmp.eq.s32.totalorder %s25, 0
      %p136 = por %p134, %p135
      %s138 = sadd.s32 %s137, 1
      %p141 = scmp.eq.s32.totalorder %s19, 3
      %p142 = scmp.ne.s32.totalorder %s137, %s139
      %p143 = scmp.eq.s32.totalorder %s19, 0
      %p144 = por %p142, %p143
      %p145 = scmp.ne.s32.totalorder %s137, %s139
      %p146 = scmp.eq.s32.totalorder %s24, 3
      %p147 = por %p145, %p146
      %p148 = scmp.ne.s32.totalorder %s139, %s140
      %p149 = scmp.eq.s32.totalorder %s24, 0
      %p150 = por %p148, %p149
      %p151 = scmp.ne.s32.totalorder %s139, %s140
      %p152 = scmp.eq.s32.totalorder %s25, 3
      %p153 = por %p151, %p152
      %p155 = scmp.ne.s32.totalorder %s140, %s154
      %p156 = scmp.eq.s32.totalorder %s25, 0
      %p157 = por %p155, %p156
      %s159 = sadd.s32 %s158, 1
      %p162 = scmp.eq.s32.totalorder %s19, 3
      %p163 = scmp.ne.s32.totalorder %s158, %s160
      %p164 = scmp.eq.s32.totalorder %s19, 0
      %p165 = por %p163, %p164
      %p166 = scmp.ne.s32.totalorder %s158, %s160
      %p167 = scmp.eq.s32.totalorder %s24, 3
      %p168 = por %p166, %p167
      %p169 = scmp.ne.s32.totalorder %s160, %s161
      %p170 = scmp.eq.s32.totalorder %s24, 0
      %p171 = por %p169, %p170
      %p172 = scmp.ne.s32.totalorder %s160, %s161
      %p173 = scmp.eq.s32.totalorder %s25, 3
      %p174 = por %p172, %p173
      %p176 = scmp.ne.s32.totalorder %s161, %s175
      %p177 = scmp.eq.s32.totalorder %s25, 0
      %p178 = por %p176, %p177
      %s180 = sadd.s32 %s179, 1
      %p183 = scmp.eq.s32.totalorder %s19, 3
      %p184 = scmp.ne.s32.totalorder %s179, %s181
      %p185 = scmp.eq.s32.totalorder %s19, 0
      %p186 = por %p184, %p185
      %p187 = scmp.ne.s32.totalorder %s179, %s181
      %p188 = scmp.eq.s32.totalorder %s24, 3
      %p189 = por %p187, %p188
      %p190 = scmp.ne.s32.totalorder %s181, %s182
      %p191 = scmp.eq.s32.totalorder %s24, 0
      %p192 = por %p190, %p191
      %p193 = scmp.ne.s32.totalorder %s181, %s182
      %p194 = scmp.eq.s32.totalorder %s25, 3
      %p195 = por %p193, %p194
      %p197 = scmp.ne.s32.totalorder %s182, %s196
      %p198 = scmp.eq.s32.totalorder %s25, 0
      %p199 = por %p197, %p198
      %s201 = sadd.s32 %s200, 1
      %p204 = scmp.eq.s32.totalorder %s19, 3
      %p205 = scmp.ne.s32.totalorder %s200, %s202
      %p206 = scmp.eq.s32.totalorder %s19, 0
      %p207 = por %p205, %p206
      %p208 = scmp.ne.s32.totalorder %s200, %s202
      %p209 = scmp.eq.s32.totalorder %s24, 3
      %p210 = por %p208, %p209
      %p211 = scmp.ne.s32.totalorder %s202, %s203
      %p212 = scmp.eq.s32.totalorder %s24, 0
      %p213 = por %p211, %p212
      %p214 = scmp.ne.s32.totalorder %s202, %s203
      %p215 = scmp.eq.s32.totalorder %s25, 3
      %p216 = por %p214, %p215
      %p218 = scmp.ne.s32.totalorder %s203, %s217
      %p219 = scmp.eq.s32.totalorder %s25, 0
      %p220 = por %p218, %p219
      %s221 = ssub.s32 %s19, %s26
      %p222 = scmp.eq.s32.totalorder %s221, 0
      %s224 = sadd.s32 %s223, 1
      %s225 = scalar_select %p222, %s223, %s224
      %p228 = pneg %p222
      %p229 = scmp.eq.s32.totalorder %s19, 3
      %p230 = por %p228, %p229
      %p231 = scmp.ne.s32.totalorder %s223, %s226
      %p232 = scmp.eq.s32.totalorder %s19, 0
      %p233 = por %p231, %p232
      %p234 = scmp.ne.s32.totalorder %s223, %s226
      %p235 = scmp.eq.s32.totalorder %s24, 3
      %p236 = por %p234, %p235
      %p237 = scmp.ne.s32.totalorder %s226, %s227
      %p238 = scmp.eq.s32.totalorder %s24, 0
      %p239 = por %p237, %p238
      %p240 = scmp.ne.s32.totalorder %s226, %s227
      %p241 = scmp.eq.s32.totalorder %s25, 3
      %p242 = por %p240, %p241
      %p244 = scmp.ne.s32.totalorder %s227, %s243
      %p245 = scmp.eq.s32.totalorder %s25, 0
      %p246 = por %p244, %p245
      %p247 = scmp.le.s32.totalorder 1, %s19
      %p248 = scmp.lt.s32.totalorder %s19, 5
      %p249 = pnand %p247, %p248
      %p250 = pneg %p249
      // Predicated region
      $region9: #{tpu_custom_call.1} parent=5 // pred_check
        _
      $region10: #{tpu_custom_call.1} parent=5 // pred_check_branch
        %252 = sbr.rel (%p249) target = $region12
      $region11: #{tpu_custom_call.1} parent=5 // pred_region
        %s253 = ssub.s32 %s19, 1
        // Predicated region
        $region13: #{tpu_custom_call.1} parent=11 // pred_check
          %p254 = pneg %p66
        $region14: #{tpu_custom_call.1} parent=11 // pred_check_branch
          %256 = sbr.rel (%p254) target = $region16
        $region15: #{tpu_custom_call.1} parent=11 // pred_region
          %s258 = ssub.s32 5632, 5632
          %259 = vsyncadd [#allocation5], %s258
          %s260 = sshll.u32 [#allocation4], 4
          %s261 = int_to_ptr.vmem [resolvable:$true] %s260
          %266 = dma.hbm_to_vmem [thread:$0]  %s1, 5632, %s261, [#allocation5], 128, 128, 8
        $region16: #{tpu_custom_call.1} parent=11 // pred_fallthru
          _
        // Predicated region
        $region17: #{tpu_custom_call.1} parent=11 // pred_check
          %p267 = pneg %p87
        $region18: #{tpu_custom_call.1} parent=11 // pred_check_branch
          %269 = sbr.rel (%p267) target = $region20
        $region19: #{tpu_custom_call.1} parent=11 // pred_region
          _
        $region20: #{tpu_custom_call.1} parent=11 // pred_fallthru
          _
        // Predicated region
        $region21: #{tpu_custom_call.1} parent=11 // pred_check
          %p270 = pneg %p108
        $region22: #{tpu_custom_call.1} parent=11 // pred_check_branch
          %272 = sbr.rel (%p270) target = $region24
        $region23: #{tpu_custom_call.1} parent=11 // pred_region
          _
        $region24: #{tpu_custom_call.1} parent=11 // pred_fallthru
          _
        // Predicated region
        $region25: #{tpu_custom_call.1} parent=11 // pred_check
          %p273 = pneg %p129
        $region26: #{tpu_custom_call.1} parent=11 // pred_check_branch
          %275 = sbr.rel (%p273) target = $region28
        $region27: #{tpu_custom_call.1} parent=11 // pred_region
          _
        $region28: #{tpu_custom_call.1} parent=11 // pred_fallthru
          _
        // Predicated region
        $region29: #{tpu_custom_call.1} parent=11 // pred_check
          %p276 = pneg %p150
        $region30: #{tpu_custom_call.1} parent=11 // pred_check_branch
          %278 = sbr.rel (%p276) target = $region32
        $region31: #{tpu_custom_call.1} parent=11 // pred_region
          %s280 = ssub.s32 2048, 2048
          %281 = vsyncadd [#allocation5], %s280
          %s282 = sshll.u32 [#allocation6], 4
          %s283 = int_to_ptr.vmem [resolvable:$true] %s282
          %288 = dma.hbm_to_vmem [thread:$0]  %s5, 2048, %s283, [#allocation5], 128, 128, 8
        $region32: #{tpu_custom_call.1} parent=11 // pred_fallthru
          _
        // Predicated region
        $region33: #{tpu_custom_call.1} parent=11 // pred_check
          %p289 = pneg %p171
        $region34: #{tpu_custom_call.1} parent=11 // pred_check_branch
          %291 = sbr.rel (%p289) target = $region36
        $region35: #{tpu_custom_call.1} parent=11 // pred_region
          _
        $region36: #{tpu_custom_call.1} parent=11 // pred_fallthru
          _
        // Predicated region
        $region37: #{tpu_custom_call.1} parent=11 // pred_check
          %p292 = pneg %p192
        $region38: #{tpu_custom_call.1} parent=11 // pred_check_branch
          %294 = sbr.rel (%p292) target = $region40
        $region39: #{tpu_custom_call.1} parent=11 // pred_region
          _
        $region40: #{tpu_custom_call.1} parent=11 // pred_fallthru
          _
        // Predicated region
        $region41: #{tpu_custom_call.1} parent=11 // pred_check
          %p295 = pneg %p213
        $region42: #{tpu_custom_call.1} parent=11 // pred_check_branch
          %297 = sbr.rel (%p295) target = $region44
        $region43: #{tpu_custom_call.1} parent=11 // pred_region
          _
        $region44: #{tpu_custom_call.1} parent=11 // pred_fallthru
          _
      $region12: #{tpu_custom_call.1} parent=5 // pred_fallthru
        _
      %p298 = scmp.lt.s32.totalorder %s19, 4
      // Predicated region
      $region45: #{tpu_custom_call.1} parent=5 // pred_check
        %p299 = pneg %p298
      $region46: #{tpu_custom_call.1} parent=5 // pred_check_branch
        %301 = sbr.rel (%p299) target = $region48
      $region47: #{tpu_custom_call.1} parent=5 // pred_region
        // Predicated region
        $region49: #{tpu_custom_call.1} parent=47 // pred_check
          %p302 = pneg %p39
        $region50: #{tpu_custom_call.1} parent=47 // pred_check_branch
          %304 = sbr.rel (%p302) target = $region52
        $region51: #{tpu_custom_call.1} parent=47 // pred_region
          %s305 = sand.u32 %s29, 1
          %s306 = scalar_lea.sflag [#allocation3], %s305
          %s307 = sand.u32 %s29, 1
          %s308 = smul.addr %s307, 192
          %s309 = scalar_lea.vmem [#allocation2], %s308
          %s310 = smul.u32 8, %s19
          %s311 = ssub.s32 25, %s310
          %p312 = scmp.lt.s32.totalorder %s311, 8
          %s313 = scalar_select %p312, %s311, 8
          %s314 = smul.u32 128, %s313
          %s315 = smul.u32 %s314, 3
          %s317 = ssub.s32 3072, %s315
          %318 = vsyncadd %s306, %s317
          %p319 = scmp.ne.s32.totalorder 0, %s315
          %s320 = smul.addr %s310, 3
          %s321 = smul.addr %s320, 128
          %s322 = scalar_lea.hbm %s0, %s321
          %s323 = smul.u32 24, %s313
          %s324 = sshll.u32 %s309, 4
          %s325 = int_to_ptr.vmem [resolvable:$true] %s324
          %s326 = sshll.u32 %s323, 4
          %330 = dma.hbm_to_vmem [thread:$0]  (%p319), %s322, %s326, %s325, %s306, 384, 384, 24
        $region52: #{tpu_custom_call.1} parent=47 // pred_fallthru
          _
      $region48: #{tpu_custom_call.1} parent=5 // pred_fallthru
        _
      %p331 = scmp.le.s32.totalorder 1, %s19
      %p332 = scmp.lt.s32.totalorder %s19, 5
      %p333 = pnand %p331, %p332
      %p334 = pneg %p333
      // Predicated region
      $region53: #{tpu_custom_call.1} parent=5 // pred_check
        _
      $region54: #{tpu_custom_call.1} parent=5 // pred_check_branch
        %336 = sbr.rel (%p333) target = $region56
      $region55: #{tpu_custom_call.1} parent=5 // pred_region
        %s337 = ssub.s32 %s19, 1
        %s338 = sand.u32 %s32, 1
        %s339 = scalar_lea.sflag [#allocation3], %s338
        %s340 = sand.u32 %s32, 1
        %s341 = smul.addr %s340, 192
        %s342 = scalar_lea.vmem [#allocation2], %s341
        // Predicated region
        $region57: #{tpu_custom_call.1} parent=55 // pred_check
          %p343 = pneg %p45
        $region58: #{tpu_custom_call.1} parent=55 // pred_check_branch
          %345 = sbr.rel (%p343) target = $region60
        $region59: #{tpu_custom_call.1} parent=55 // pred_region
          %346 = dma.done %s339, 3072
        $region60: #{tpu_custom_call.1} parent=55 // pred_fallthru
          _
        // Predicated region
        $region61: #{tpu_custom_call.1} parent=55 // pred_check
          %p347 = pneg %p66
        $region62: #{tpu_custom_call.1} parent=55 // pred_check_branch
          %349 = sbr.rel (%p347) target = $region64
        $region63: #{tpu_custom_call.1} parent=55 // pred_region
          %350 = dma.done [#allocation5], 5632
        $region64: #{tpu_custom_call.1} parent=55 // pred_fallthru
          _
        // Predicated region
        $region65: #{tpu_custom_call.1} parent=55 // pred_check
          %p351 = pneg %p150
        $region66: #{tpu_custom_call.1} parent=55 // pred_check_branch
          %353 = sbr.rel (%p351) target = $region68
        $region67: #{tpu_custom_call.1} parent=55 // pred_region
          %354 = dma.done [#allocation5], 2048
        $region68: #{tpu_custom_call.1} parent=55 // pred_fallthru
          _
        %s355 = sand.u32 %s32, 1
        %s356 = scalar_lea.sflag [#allocation3], %s355
        %s357 = sand.u32 %s32, 1
        %s358 = smul.addr %s357, 192
        %s359 = scalar_lea.vmem [#allocation2], %s358
        %p360 = pneg %p45
        %p361 = pneg %p42
        %p362 = pneg %p66
        %p363 = pneg %p63
        %p364 = pneg %p87
        %p365 = pneg %p84
        %p366 = pneg %p108
        %p367 = pneg %p105
        %p368 = pneg %p129
        %p369 = pneg %p126
        %p370 = pneg %p150
        %p371 = pneg %p147
        %p372 = pneg %p171
        %p373 = pneg %p168
        %p374 = pneg %p192
        %p375 = pneg %p189
        %p376 = pneg %p213
        %p377 = pneg %p210
        %p378 = pneg %p239
        %p379 = pneg %p236
        %s380 = sand.u32 %s226, 1
        %s381 = sand.u32 %s226, 1
        %s382 = smul.addr %s381, 64
        %s383 = scalar_lea.vmem [#allocation7], %s382
        %s384 = smul.u32 8, %s24
        %s385 = ssub.s32 25, %s384
        %p386 = scmp.lt.s32.totalorder %s385, 8
        %s387 = scalar_select %p386, %s385, 8
        %s388 = smul.u32 128, %s387
        %s389 = smul.u32 %s388, 3
        %s390 = smul.u32 8, %s24
        %s391 = ssub.s32 25, %s390
        %p392 = scmp.lt.s32.totalorder %s391, 8
        %s393 = scalar_select %p392, %s391, 8
        %s394 = smul.u32 128, %s393
        %v395 = vld [vmem:[%s342] sm:$0xff]
        %v396 = vld [vmem:[%s342 + $0x8] sm:$0xff]
        %v397 = vld [vmem:[%s342 + $0x10] sm:$0xff]
        %v398 = vld [vmem:[%s342 + $0x18] sm:$0xff]
        %v399 = vld [vmem:[%s342 + $0x20] sm:$0xff]
        %v400 = vld [vmem:[%s342 + $0x28] sm:$0xff]
        %v401 = vld [vmem:[%s342 + $0x30] sm:$0xff]
        %v402 = vld [vmem:[%s342 + $0x38] sm:$0xff]
        %v403 = vld [vmem:[%s342 + $0x40] sm:$0xff]
        %v404 = vld [vmem:[%s342 + $0x48] sm:$0xff]
        %v405 = vld [vmem:[%s342 + $0x50] sm:$0xff]
        %v406 = vld [vmem:[%s342 + $0x58] sm:$0xff]
        %v407 = vld [vmem:[%s342 + $0x60] sm:$0xff]
        %v408 = vld [vmem:[%s342 + $0x68] sm:$0xff]
        %v409 = vld [vmem:[%s342 + $0x70] sm:$0xff]
        %v410 = vld [vmem:[%s342 + $0x78] sm:$0xff]
        %v411 = vld [vmem:[%s342 + $0x80] sm:$0xff]
        %v412 = vld [vmem:[%s342 + $0x88] sm:$0xff]
        %v413 = vld [vmem:[%s342 + $0x90] sm:$0xff]
        %v414 = vld [vmem:[%s342 + $0x98] sm:$0xff]
        %v415 = vld [vmem:[%s342 + $0xa0] sm:$0xff]
        %v416 = vld [vmem:[%s342 + $0xa8] sm:$0xff]
        %v417 = vld [vmem:[%s342 + $0xb0] sm:$0xff]
        %v418 = vld [vmem:[%s342 + $0xb8] sm:$0xff]
        %v419 = vld [vmem:[#allocation4] sm:$0xff]
        %v420 = vld [vmem:[#allocation4 + $0x8] sm:$0xff]
        %v421 = vld [vmem:[#allocation4 + $0x10] sm:$0xff]
        %v422 = vld [vmem:[#allocation4 + $0x18] sm:$0xff]
        %v423 = vld [vmem:[#allocation4 + $0x20] sm:$0xff]
        %v424 = vld [vmem:[#allocation4 + $0x28] sm:$0xff]
        %v425 = vld [vmem:[#allocation4 + $0x30] sm:$0xff]
        %v426 = vld [vmem:[#allocation4 + $0x38] sm:$0xff]
        %v427 = vld [vmem:[#allocation4 + $0x40] sm:$0xff]
        %v428 = vld [vmem:[#allocation4 + $0x48] sm:$0xff]
        %v429 = vld [vmem:[#allocation4 + $0x50] sm:$0xff]
        %v430 = vld [vmem:[#allocation4 + $0x58] sm:$0xff]
        %v431 = vld [vmem:[#allocation4 + $0x60] sm:$0xff]
        %v432 = vld [vmem:[#allocation4 + $0x68] sm:$0xff]
        %v433 = vld [vmem:[#allocation4 + $0x70] sm:$0xff]
        %v434 = vld [vmem:[#allocation4 + $0x78] sm:$0xff]
        %v435 = vld [vmem:[#allocation4 + $0x80] sm:$0xff]
        %v436 = vld [vmem:[#allocation4 + $0x88] sm:$0xff]
        %v437 = vld [vmem:[#allocation4 + $0x90] sm:$0xff]
        %v438 = vld [vmem:[#allocation4 + $0x98] sm:$0xff]
        %v439 = vld [vmem:[#allocation4 + $0xa0] sm:$0xff]
        %v440 = vld [vmem:[#allocation4 + $0xa8] sm:$0xff]
        %v441 = vld [vmem:[#allocation4 + $0xb0] sm:$0xff]
        %v442 = vld [vmem:[#allocation4 + $0xb8] sm:$0xff]
        %v443 = vld [vmem:[#allocation4 + $0xc0] sm:$0xff]
        %v444 = vld [vmem:[#allocation4 + $0xc8] sm:$0xff]
        %v445 = vld [vmem:[#allocation4 + $0xd0] sm:$0xff]
        %v446 = vld [vmem:[#allocation4 + $0xd8] sm:$0xff]
        %v447 = vld [vmem:[#allocation4 + $0xe0] sm:$0xff]
        %v448 = vld [vmem:[#allocation4 + $0xe8] sm:$0xff]
        %v449 = vld [vmem:[#allocation4 + $0xf0] sm:$0xff]
        %v450 = vld [vmem:[#allocation4 + $0xf8] sm:$0xff]
        %v451 = vld [vmem:[#allocation4 + $0x100] sm:$0xff]
        %v452 = vld [vmem:[#allocation4 + $0x108] sm:$0xff]
        %v453 = vld [vmem:[#allocation4 + $0x110] sm:$0xff]
        %v454 = vld [vmem:[#allocation4 + $0x118] sm:$0xff]
        %v455 = vld [vmem:[#allocation4 + $0x120] sm:$0xff]
        %v456 = vld [vmem:[#allocation4 + $0x128] sm:$0xff]
        %v457 = vld [vmem:[#allocation4 + $0x130] sm:$0xff]
        %v458 = vld [vmem:[#allocation4 + $0x138] sm:$0xff]
        %v459 = vld [vmem:[#allocation4 + $0x140] sm:$0xff]
        %v460 = vld [vmem:[#allocation4 + $0x148] sm:$0xff]
        %v461 = vld [vmem:[#allocation4 + $0x150] sm:$0xff]
        %v462 = vld [vmem:[#allocation4 + $0x158] sm:$0x3f]
        %v463 = vld [vmem:[%s2] sm:$0x1]
        %v465 = vlaneseq
        %v466 = vshrl.u32 %v465, 7
        %v467 = vsub.s32 0, %v466
        %v468 = vrot.slane %v463, %v467
        %vm470 = vcmask 769024
        %v472 = vsel %vm470, %v397, 0
        %v475 = vsel %vm470, %v400, 0
        %v478 = vsel %vm470, %v403, 0
        %v481 = vsel %vm470, %v406, 0
        %v484 = vsel %vm470, %v409, 0
        %v487 = vsel %vm470, %v412, 0
        %v490 = vsel %vm470, %v415, 0
        %v493 = vsel %vm470, %v418, 0
        %vm495 = vcmask 1045504
        %v497 = vsel %vm495, %v462, 0
        %499 = vmatprep.subr.mxu0 0.0
        %500 = vmatpush1.msra.mxu0 %v419
        %501 = vmatprep.subr.mxu0 0.0
        %502 = vmatpush1.msra.mxu0 %v420
        %503 = vmatprep.subr.mxu0 0.0
        %504 = vmatpush1.msra.mxu0 %v421
        %505 = vmatprep.subr.mxu0 0.0
        %506 = vmatpush1.msra.mxu0 %v422
        %507 = vmatprep.subr.mxu0 0.0
        %508 = vmatpush1.msra.mxu0 %v423
        %509 = vmatprep.subr.mxu0 0.0
        %510 = vmatpush1.msra.mxu0 %v424
        %511 = vmatprep.subr.mxu0 0.0
        %512 = vmatpush1.msra.mxu0 %v425
        %513 = vmatprep.subr.mxu0 0.0
        %514 = vmatpush1.msra.mxu0 %v426
        %515 = vmatprep.subr.mxu0 0.0
        %516 = vmatpush1.msra.mxu0 %v427
        %517 = vmatprep.subr.mxu0 0.0
        %518 = vmatpush1.msra.mxu0 %v428
        %519 = vmatprep.subr.mxu0 0.0
        %520 = vmatpush1.msra.mxu0 %v429
        %521 = vmatprep.subr.mxu0 0.0
        %522 = vmatpush1.msra.mxu0 %v430
        %523 = vmatprep.subr.mxu0 0.0
        %524 = vmatpush1.msra.mxu0 %v431
        %525 = vmatprep.subr.mxu0 0.0
        %526 = vmatpush1.msra.mxu0 %v432
        %527 = vmatprep.subr.mxu0 0.0
        %528 = vmatpush1.msra.mxu0 %v433
        %529 = vmatprep.subr.mxu0 0.0
        %530 = vmatpush1.msra.mxu0 %v434
        %531 = vmatprep.subr.mxu0 0.0
        %532 = vmatpush1.msra.mxu0 %v435
        %533 = vmatprep.subr.mxu0 0.0
        %534 = vmatpush1.msra.mxu0 %v436
        %535 = vmatprep.subr.mxu0 0.0
        %536 = vmatpush1.msra.mxu0 %v437
        %537 = vmatprep.subr.mxu0 0.0
        %538 = vmatpush1.msra.mxu0 %v438
        %539 = vmatprep.subr.mxu0 0.0
        %540 = vmatpush1.msra.mxu0 %v439
        %541 = vmatprep.subr.mxu0 0.0
        %542 = vmatpush1.msra.mxu0 %v440
        %543 = vmatprep.subr.mxu0 0.0
        %544 = vmatpush1.msra.mxu0 %v441
        %545 = vmatprep.subr.mxu0 0.0
        %546 = vmatpush1.msra.mxu0 %v442
        %547 = vmatprep.subr.mxu0 0.0
        %548 = vmatpush1.msra.mxu0 %v443
        %549 = vmatprep.subr.mxu0 0.0
        %550 = vmatpush1.msra.mxu0 %v444
        %551 = vmatprep.subr.mxu0 0.0
        %552 = vmatpush1.msra.mxu0 %v445
        %553 = vmatprep.subr.mxu0 0.0
        %554 = vmatpush1.msra.mxu0 %v446
        %555 = vmatprep.subr.mxu0 0.0
        %556 = vmatpush1.msra.mxu0 %v447
        %557 = vmatprep.subr.mxu0 0.0
        %558 = vmatpush1.msra.mxu0 %v448
        %559 = vmatprep.subr.mxu0 0.0
        %560 = vmatpush1.msra.mxu0 %v449
        %561 = vmatprep.subr.mxu0 0.0
        %562 = vmatpush1.msra.mxu0 %v450
        %563 = vmatprep.mubr.f32.mxu0 %v396
        %564 = vmatmul.mubr.f32.gmra.mrb[0].mxu0 %v395
        %v565 = vpop.f32.mrb[0].mxu0
        %v566 = vadd.f32 %v468, %v565
        %v567 = vpop.f32.mrb[0].mxu0
        %568 = vmatprep.mubr.f32.mxu0 %v399
        %569 = vmatmul.mubr.f32.gmra.mrb[0].mxu0 %v398
        %v570 = vpop.f32.mrb[0].mxu0
        %v571 = vadd.f32 %v468, %v570
        %v572 = vpop.f32.mrb[0].mxu0
        %573 = vmatprep.mubr.f32.mxu0 %v402
        %574 = vmatmul.mubr.f32.gmra.mrb[0].mxu0 %v401
        %v575 = vpop.f32.mrb[0].mxu0
        %v576 = vadd.f32 %v468, %v575
        %v577 = vpop.f32.mrb[0].mxu0
        %578 = vmatprep.mubr.f32.mxu0 %v405
        %579 = vmatmul.mubr.f32.gmra.mrb[0].mxu0 %v404
        %v580 = vpop.f32.mrb[0].mxu0
        %v581 = vadd.f32 %v468, %v580
        %v582 = vpop.f32.mrb[0].mxu0
        %583 = vmatprep.mubr.f32.mxu0 %v408
        %584 = vmatmul.mubr.f32.gmra.mrb[0].mxu0 %v407
        %v585 = vpop.f32.mrb[0].mxu0
        %v586 = vadd.f32 %v468, %v585
        %v587 = vpop.f32.mrb[0].mxu0
        %588 = vmatprep.mubr.f32.mxu0 %v411
        %589 = vmatmul.mubr.f32.gmra.mrb[0].mxu0 %v410
        %v590 = vpop.f32.mrb[0].mxu0
        %v591 = vadd.f32 %v468, %v590
        %v592 = vpop.f32.mrb[0].mxu0
        %593 = vmatprep.mubr.f32.mxu0 %v414
        %594 = vmatmul.mubr.f32.gmra.mrb[0].mxu0 %v413
        %v595 = vpop.f32.mrb[0].mxu0
        %v596 = vadd.f32 %v468, %v595
        %v597 = vpop.f32.mrb[0].mxu0
        %598 = vmatprep.mubr.f32.mxu0 %v417
        %599 = vmatmul.mubr.f32.gmra.mrb[0].mxu0 %v416
        %v600 = vpop.f32.mrb[0].mxu0
        %v601 = vadd.f32 %v468, %v600
        %v602 = vpop.f32.mrb[0].mxu0
        %603 = vdwg.mxu0
        %604 = vmatprep.subr.mxu0 0.0
        %605 = vmatpush1.msra.mxu0 %v451
        %606 = vmatprep.subr.mxu0 0.0
        %607 = vmatpush1.msra.mxu0 %v452
        %608 = vmatprep.subr.mxu0 0.0
        %609 = vmatpush1.msra.mxu0 %v453
        %610 = vmatprep.subr.mxu0 0.0
        %611 = vmatpush1.msra.mxu0 %v454
        %612 = vmatprep.subr.mxu0 0.0
        %613 = vmatpush1.msra.mxu0 %v455
        %614 = vmatprep.subr.mxu0 0.0
        %615 = vmatpush1.msra.mxu0 %v456
        %616 = vmatprep.subr.mxu0 0.0
        %617 = vmatpush1.msra.mxu0 %v457
        %618 = vmatprep.subr.mxu0 0.0
        %619 = vmatpush1.msra.mxu0 %v458
        %620 = vmatprep.subr.mxu0 0.0
        %621 = vmatpush1.msra.mxu0 %v459
        %622 = vmatprep.subr.mxu0 0.0
        %623 = vmatpush1.msra.mxu0 %v460
        %624 = vmatprep.subr.mxu0 0.0
        %625 = vmatpush1.msra.mxu0 %v461
        %626 = vmatprep.subr.mxu0 0.0
        %627 = vmatpush1.msra.mxu0 %v497
        %628 = vmatprep.subr.mxu0 0.0
        %629 = vmatpush1.msra.mxu0 0.0
        %630 = vmatprep.subr.mxu0 0.0
        %631 = vmatpush1.msra.mxu0 0.0
        %632 = vmatprep.subr.mxu0 0.0
        %633 = vmatpush1.msra.mxu0 0.0
        %634 = vmatprep.subr.mxu0 0.0
        %635 = vmatpush1.msra.mxu0 0.0
        %636 = vmatprep.subr.mxu0 0.0
        %637 = vmatpush1.msra.mxu0 0.0
        %638 = vmatprep.subr.mxu0 0.0
        %639 = vmatpush1.msra.mxu0 0.0
        %640 = vmatprep.subr.mxu0 0.0
        %641 = vmatpush1.msra.mxu0 0.0
        %642 = vmatprep.subr.mxu0 0.0
        %643 = vmatpush1.msra.mxu0 0.0
        %644 = vmatprep.subr.mxu0 0.0
        %645 = vmatpush1.msra.mxu0 0.0
        %646 = vmatprep.subr.mxu0 0.0
        %647 = vmatpush1.msra.mxu0 0.0
        %648 = vmatprep.subr.mxu0 0.0
        %649 = vmatpush1.msra.mxu0 0.0
        %650 = vmatprep.subr.mxu0 0.0
        %651 = vmatpush1.msra.mxu0 0.0
        %652 = vmatprep.subr.mxu0 0.0
        %653 = vmatpush1.msra.mxu0 0.0
        %654 = vmatprep.subr.mxu0 0.0
        %655 = vmatpush1.msra.mxu0 0.0
        %656 = vmatprep.subr.mxu0 0.0
        %657 = vmatpush1.msra.mxu0 0.0
        %658 = vmatprep.subr.mxu0 0.0
        %659 = vmatpush1.msra.mxu0 0.0
        %660 = vmatprep.subr.mxu0 0.0
        %661 = vmatpush1.msra.mxu0 0.0
        %662 = vmatprep.subr.mxu0 0.0
        %663 = vmatpush1.msra.mxu0 0.0
        %664 = vmatprep.subr.mxu0 0.0
        %665 = vmatpush1.msra.mxu0 0.0
        %666 = vmatprep.subr.mxu0 0.0
        %667 = vmatpush1.msra.mxu0 0.0
        %668 = vmatprep.mubr.f32.mxu0 0.0
        %669 = vmatmul.mubr.f32.gmra.mrb[0].mxu0 %v472
        %v670 = vpop.f32.mrb[0].mxu0
        %v671 = vadd.f32 %v566, %v670
        %v672 = vpop.f32.mrb[0].mxu0
        %673 = vmatprep.mubr.f32.mxu0 0.0
        %674 = vmatmul.mubr.f32.gmra.mrb[0].mxu0 %v475
        %v675 = vpop.f32.mrb[0].mxu0
        %v676 = vadd.f32 %v571, %v675
        %v677 = vpop.f32.mrb[0].mxu0
        %678 = vmatprep.mubr.f32.mxu0 0.0
        %679 = vmatmul.mubr.f32.gmra.mrb[0].mxu0 %v478
        %v680 = vpop.f32.mrb[0].mxu0
        %v681 = vadd.f32 %v576, %v680
        %v682 = vpop.f32.mrb[0].mxu0
        %683 = vmatprep.mubr.f32.mxu0 0.0
        %684 = vmatmul.mubr.f32.gmra.mrb[0].mxu0 %v481
        %v685 = vpop.f32.mrb[0].mxu0
        %v686 = vadd.f32 %v581, %v685
        %v687 = vpop.f32.mrb[0].mxu0
        %688 = vmatprep.mubr.f32.mxu0 0.0
        %689 = vmatmul.mubr.f32.gmra.mrb[0].mxu0 %v484
        %v690 = vpop.f32.mrb[0].mxu0
        %v691 = vadd.f32 %v586, %v690
        %v692 = vpop.f32.mrb[0].mxu0
        %693 = vmatprep.mubr.f32.mxu0 0.0
        %694 = vmatmul.mubr.f32.gmra.mrb[0].mxu0 %v487
        %v695 = vpop.f32.mrb[0].mxu0
        %v696 = vadd.f32 %v591, %v695
        %v697 = vpop.f32.mrb[0].mxu0
        %698 = vmatprep.mubr.f32.mxu0 0.0
        %699 = vmatmul.mubr.f32.gmra.mrb[0].mxu0 %v490
        %v700 = vpop.f32.mrb[0].mxu0
        %v701 = vadd.f32 %v596, %v700
        %v702 = vpop.f32.mrb[0].mxu0
        %703 = vmatprep.mubr.f32.mxu0 0.0
        %704 = vmatmul.mubr.f32.gmra.mrb[0].mxu0 %v493
        %v705 = vpop.f32.mrb[0].mxu0
        %v706 = vadd.f32 %v601, %v705
        %v707 = vpop.f32.mrb[0].mxu0
        %708 = vdwg.mxu0
        %v709 = vmax.f32 %v671, 0.0
        %v710 = vmax.f32 %v676, 0.0
        %v711 = vmax.f32 %v681, 0.0
        %v712 = vmax.f32 %v686, 0.0
        %v713 = vmax.f32 %v691, 0.0
        %v714 = vmax.f32 %v696, 0.0
        %v715 = vmax.f32 %v701, 0.0
        %v716 = vmax.f32 %v706, 0.0
        %v717 = vld [vmem:[%s3] sm:$0xff]
        %v718 = vld [vmem:[%s3 + $0x8] sm:$0xff]
        %v719 = vld [vmem:[%s3 + $0x10] sm:$0xff]
        %v720 = vld [vmem:[%s3 + $0x18] sm:$0xff]
        %v721 = vld [vmem:[%s3 + $0x20] sm:$0xff]
        %v722 = vld [vmem:[%s3 + $0x28] sm:$0xff]
        %v723 = vld [vmem:[%s3 + $0x30] sm:$0xff]
        %v724 = vld [vmem:[%s3 + $0x38] sm:$0xff]
        %v725 = vld [vmem:[%s3 + $0x40] sm:$0xff]
        %v726 = vld [vmem:[%s3 + $0x48] sm:$0xff]
        %v727 = vld [vmem:[%s3 + $0x50] sm:$0xff]
        %v728 = vld [vmem:[%s3 + $0x58] sm:$0xff]
        %v729 = vld [vmem:[%s3 + $0x60] sm:$0xff]
        %v730 = vld [vmem:[%s3 + $0x68] sm:$0xff]
        %v731 = vld [vmem:[%s3 + $0x70] sm:$0xff]
        %v732 = vld [vmem:[%s3 + $0x78] sm:$0xff]
        %v733 = vld [vmem:[%s4] sm:$0x1]
        %v735 = vlaneseq
        %v736 = vshrl.u32 %v735, 7
        %v737 = vsub.s32 0, %v736
        %v738 = vrot.slane %v733, %v737
        %740 = vmatprep.subr.mxu0 0.0
        %741 = vmatpush1.msra.mxu0 %v717
        %742 = vmatprep.subr.mxu0 0.0
        %743 = vmatpush1.msra.mxu0 %v718
        %744 = vmatprep.subr.mxu0 0.0
        %745 = vmatpush1.msra.mxu0 %v719
        %746 = vmatprep.subr.mxu0 0.0
        %747 = vmatpush1.msra.mxu0 %v720
        %748 = vmatprep.subr.mxu0 0.0
        %749 = vmatpush1.msra.mxu0 %v721
        %750 = vmatprep.subr.mxu0 0.0
        %751 = vmatpush1.msra.mxu0 %v722
        %752 = vmatprep.subr.mxu0 0.0
        %753 = vmatpush1.msra.mxu0 %v723
        %754 = vmatprep.subr.mxu0 0.0
        %755 = vmatpush1.msra.mxu0 %v724
        %756 = vmatprep.subr.mxu0 0.0
        %757 = vmatpush1.msra.mxu0 %v725
        %758 = vmatprep.subr.mxu0 0.0
        %759 = vmatpush1.msra.mxu0 %v726
        %760 = vmatprep.subr.mxu0 0.0
        %761 = vmatpush1.msra.mxu0 %v727
        %762 = vmatprep.subr.mxu0 0.0
        %763 = vmatpush1.msra.mxu0 %v728
        %764 = vmatprep.subr.mxu0 0.0
        %765 = vmatpush1.msra.mxu0 %v729
        %766 = vmatprep.subr.mxu0 0.0
        %767 = vmatpush1.msra.mxu0 %v730
        %768 = vmatprep.subr.mxu0 0.0
        %769 = vmatpush1.msra.mxu0 %v731
        %770 = vmatprep.subr.mxu0 0.0
        %771 = vmatpush1.msra.mxu0 %v732
        %772 = vmatprep.subr.mxu0 0.0
        %773 = vmatpush1.msra.mxu0 0.0
        %774 = vmatprep.subr.mxu0 0.0
        %775 = vmatpush1.msra.mxu0 0.0
        %776 = vmatprep.subr.mxu0 0.0
        %777 = vmatpush1.msra.mxu0 0.0
        %778 = vmatprep.subr.mxu0 0.0
        %779 = vmatpush1.msra.mxu0 0.0
        %780 = vmatprep.subr.mxu0 0.0
        %781 = vmatpush1.msra.mxu0 0.0
        %782 = vmatprep.subr.mxu0 0.0
        %783 = vmatpush1.msra.mxu0 0.0
        %784 = vmatprep.subr.mxu0 0.0
        %785 = vmatpush1.msra.mxu0 0.0
        %786 = vmatprep.subr.mxu0 0.0
        %787 = vmatpush1.msra.mxu0 0.0
        %788 = vmatprep.subr.mxu0 0.0
        %789 = vmatpush1.msra.mxu0 0.0
        %790 = vmatprep.subr.mxu0 0.0
        %791 = vmatpush1.msra.mxu0 0.0
        %792 = vmatprep.subr.mxu0 0.0
        %793 = vmatpush1.msra.mxu0 0.0
        %794 = vmatprep.subr.mxu0 0.0
        %795 = vmatpush1.msra.mxu0 0.0
        %796 = vmatprep.subr.mxu0 0.0
        %797 = vmatpush1.msra.mxu0 0.0
        %798 = vmatprep.subr.mxu0 0.0
        %799 = vmatpush1.msra.mxu0 0.0
        %800 = vmatprep.subr.mxu0 0.0
        %801 = vmatpush1.msra.mxu0 0.0
        %802 = vmatprep.subr.mxu0 0.0
        %803 = vmatpush1.msra.mxu0 0.0
        %804 = vmatprep.mubr.f32.mxu0 0.0
        %805 = vmatmul.mubr.f32.gmra.mrb[0].mxu0 %v709
        %v806 = vpop.f32.mrb[0].mxu0
        %v807 = vadd.f32 %v738, %v806
        %v808 = vpop.f32.mrb[0].mxu0
        %809 = vmatprep.mubr.f32.mxu0 0.0
        %810 = vmatmul.mubr.f32.gmra.mrb[0].mxu0 %v710
        %v811 = vpop.f32.mrb[0].mxu0
        %v812 = vadd.f32 %v738, %v811
        %v813 = vpop.f32.mrb[0].mxu0
        %814 = vmatprep.mubr.f32.mxu0 0.0
        %815 = vmatmul.mubr.f32.gmra.mrb[0].mxu0 %v711
        %v816 = vpop.f32.mrb[0].mxu0
        %v817 = vadd.f32 %v738, %v816
        %v818 = vpop.f32.mrb[0].mxu0
        %819 = vmatprep.mubr.f32.mxu0 0.0
        %820 = vmatmul.mubr.f32.gmra.mrb[0].mxu0 %v712
        %v821 = vpop.f32.mrb[0].mxu0
        %v822 = vadd.f32 %v738, %v821
        %v823 = vpop.f32.mrb[0].mxu0
        %824 = vmatprep.mubr.f32.mxu0 0.0
        %825 = vmatmul.mubr.f32.gmra.mrb[0].mxu0 %v713
        %v826 = vpop.f32.mrb[0].mxu0
        %v827 = vadd.f32 %v738, %v826
        %v828 = vpop.f32.mrb[0].mxu0
        %829 = vmatprep.mubr.f32.mxu0 0.0
        %830 = vmatmul.mubr.f32.gmra.mrb[0].mxu0 %v714
        %v831 = vpop.f32.mrb[0].mxu0
        %v832 = vadd.f32 %v738, %v831
        %v833 = vpop.f32.mrb[0].mxu0
        %834 = vmatprep.mubr.f32.mxu0 0.0
        %835 = vmatmul.mubr.f32.gmra.mrb[0].mxu0 %v715
        %v836 = vpop.f32.mrb[0].mxu0
        %v837 = vadd.f32 %v738, %v836
        %v838 = vpop.f32.mrb[0].mxu0
        %839 = vmatprep.mubr.f32.mxu0 0.0
        %840 = vmatmul.mubr.f32.gmra.mrb[0].mxu0 %v716
        %v841 = vpop.f32.mrb[0].mxu0
        %v842 = vadd.f32 %v738, %v841
        %v843 = vpop.f32.mrb[0].mxu0
        %844 = vdwg.mxu0
        %v845 = vtanh.pop %v807
        %v846 = vtanh.pop %v812
        %v847 = vtanh.pop %v817
        %v848 = vtanh.pop %v822
        %v849 = vtanh.pop %v827
        %v850 = vtanh.pop %v832
        %v851 = vtanh.pop %v837
        %v852 = vtanh.pop %v842
        %v853 = vld [vmem:[#allocation6] sm:$0xff]
        %v854 = vld [vmem:[#allocation6 + $0x8] sm:$0xff]
        %v855 = vld [vmem:[#allocation6 + $0x10] sm:$0xff]
        %v856 = vld [vmem:[#allocation6 + $0x18] sm:$0xff]
        %v857 = vld [vmem:[#allocation6 + $0x20] sm:$0xff]
        %v858 = vld [vmem:[#allocation6 + $0x28] sm:$0xff]
        %v859 = vld [vmem:[#allocation6 + $0x30] sm:$0xff]
        %v860 = vld [vmem:[#allocation6 + $0x38] sm:$0xff]
        %v861 = vld [vmem:[#allocation6 + $0x40] sm:$0xff]
        %v862 = vld [vmem:[#allocation6 + $0x48] sm:$0xff]
        %v863 = vld [vmem:[#allocation6 + $0x50] sm:$0xff]
        %v864 = vld [vmem:[#allocation6 + $0x58] sm:$0xff]
        %v865 = vld [vmem:[#allocation6 + $0x60] sm:$0xff]
        %v866 = vld [vmem:[#allocation6 + $0x68] sm:$0xff]
        %v867 = vld [vmem:[#allocation6 + $0x70] sm:$0xff]
        %v868 = vld [vmem:[#allocation6 + $0x78] sm:$0xff]
        %v869 = vld [vmem:[%s6] sm:$0x1]
        %v871 = vlaneseq
        %v872 = vshrl.u32 %v871, 7
        %v873 = vsub.s32 0, %v872
        %v874 = vrot.slane %v869, %v873
        %876 = vmatprep.subr.mxu0 0.0
        %877 = vmatpush1.msra.mxu0 %v853
        %878 = vmatprep.subr.mxu0 0.0
        %879 = vmatpush1.msra.mxu0 %v854
        %880 = vmatprep.subr.mxu0 0.0
        %881 = vmatpush1.msra.mxu0 %v855
        %882 = vmatprep.subr.mxu0 0.0
        %883 = vmatpush1.msra.mxu0 %v856
        %884 = vmatprep.subr.mxu0 0.0
        %885 = vmatpush1.msra.mxu0 %v857
        %886 = vmatprep.subr.mxu0 0.0
        %887 = vmatpush1.msra.mxu0 %v858
        %888 = vmatprep.subr.mxu0 0.0
        %889 = vmatpush1.msra.mxu0 %v859
        %890 = vmatprep.subr.mxu0 0.0
        %891 = vmatpush1.msra.mxu0 %v860
        %892 = vmatprep.subr.mxu0 0.0
        %893 = vmatpush1.msra.mxu0 %v861
        %894 = vmatprep.subr.mxu0 0.0
        %895 = vmatpush1.msra.mxu0 %v862
        %896 = vmatprep.subr.mxu0 0.0
        %897 = vmatpush1.msra.mxu0 %v863
        %898 = vmatprep.subr.mxu0 0.0
        %899 = vmatpush1.msra.mxu0 %v864
        %900 = vmatprep.subr.mxu0 0.0
        %901 = vmatpush1.msra.mxu0 %v865
        %902 = vmatprep.subr.mxu0 0.0
        %903 = vmatpush1.msra.mxu0 %v866
        %904 = vmatprep.subr.mxu0 0.0
        %905 = vmatpush1.msra.mxu0 %v867
        %906 = vmatprep.subr.mxu0 0.0
        %907 = vmatpush1.msra.mxu0 %v868
        %908 = vmatprep.subr.mxu0 0.0
        %909 = vmatpush1.msra.mxu0 0.0
        %910 = vmatprep.subr.mxu0 0.0
        %911 = vmatpush1.msra.mxu0 0.0
        %912 = vmatprep.subr.mxu0 0.0
        %913 = vmatpush1.msra.mxu0 0.0
        %914 = vmatprep.subr.mxu0 0.0
        %915 = vmatpush1.msra.mxu0 0.0
        %916 = vmatprep.subr.mxu0 0.0
        %917 = vmatpush1.msra.mxu0 0.0
        %918 = vmatprep.subr.mxu0 0.0
        %919 = vmatpush1.msra.mxu0 0.0
        %920 = vmatprep.subr.mxu0 0.0
        %921 = vmatpush1.msra.mxu0 0.0
        %922 = vmatprep.subr.mxu0 0.0
        %923 = vmatpush1.msra.mxu0 0.0
        %924 = vmatprep.subr.mxu0 0.0
        %925 = vmatpush1.msra.mxu0 0.0
        %926 = vmatprep.subr.mxu0 0.0
        %927 = vmatpush1.msra.mxu0 0.0
        %928 = vmatprep.subr.mxu0 0.0
        %929 = vmatpush1.msra.mxu0 0.0
        %930 = vmatprep.subr.mxu0 0.0
        %931 = vmatpush1.msra.mxu0 0.0
        %932 = vmatprep.subr.mxu0 0.0
        %933 = vmatpush1.msra.mxu0 0.0
        %934 = vmatprep.subr.mxu0 0.0
        %935 = vmatpush1.msra.mxu0 0.0
        %936 = vmatprep.subr.mxu0 0.0
        %937 = vmatpush1.msra.mxu0 0.0
        %938 = vmatprep.subr.mxu0 0.0
        %939 = vmatpush1.msra.mxu0 0.0
        %940 = vmatprep.mubr.f32.mxu0 0.0
        %941 = vmatmul.mubr.f32.gmra.mrb[0].mxu0 %v845
        %v942 = vpop.f32.mrb[0].mxu0
        %v943 = vadd.f32 %v874, %v942
        %v944 = vpop.f32.mrb[0].mxu0
        %945 = vmatprep.mubr.f32.mxu0 0.0
        %946 = vmatmul.mubr.f32.gmra.mrb[0].mxu0 %v846
        %v947 = vpop.f32.mrb[0].mxu0
        %v948 = vadd.f32 %v874, %v947
        %v949 = vpop.f32.mrb[0].mxu0
        %950 = vmatprep.mubr.f32.mxu0 0.0
        %951 = vmatmul.mubr.f32.gmra.mrb[0].mxu0 %v847
        %v952 = vpop.f32.mrb[0].mxu0
        %v953 = vadd.f32 %v874, %v952
        %v954 = vpop.f32.mrb[0].mxu0
        %955 = vmatprep.mubr.f32.mxu0 0.0
        %956 = vmatmul.mubr.f32.gmra.mrb[0].mxu0 %v848
        %v957 = vpop.f32.mrb[0].mxu0
        %v958 = vadd.f32 %v874, %v957
        %v959 = vpop.f32.mrb[0].mxu0
        %960 = vmatprep.mubr.f32.mxu0 0.0
        %961 = vmatmul.mubr.f32.gmra.mrb[0].mxu0 %v849
        %v962 = vpop.f32.mrb[0].mxu0
        %v963 = vadd.f32 %v874, %v962
        %v964 = vpop.f32.mrb[0].mxu0
        %965 = vmatprep.mubr.f32.mxu0 0.0
        %966 = vmatmul.mubr.f32.gmra.mrb[0].mxu0 %v850
        %v967 = vpop.f32.mrb[0].mxu0
        %v968 = vadd.f32 %v874, %v967
        %v969 = vpop.f32.mrb[0].mxu0
        %970 = vmatprep.mubr.f32.mxu0 0.0
        %971 = vmatmul.mubr.f32.gmra.mrb[0].mxu0 %v851
        %v972 = vpop.f32.mrb[0].mxu0
        %v973 = vadd.f32 %v874, %v972
        %v974 = vpop.f32.mrb[0].mxu0
        %975 = vmatprep.mubr.f32.mxu0 0.0
        %976 = vmatmul.mubr.f32.gmra.mrb[0].mxu0 %v852
        %v977 = vpop.f32.mrb[0].mxu0
        %v978 = vadd.f32 %v874, %v977
        %v979 = vpop.f32.mrb[0].mxu0
        %980 = vdwg.mxu0
        %v981 = vmax.f32 %v943, 0.0
        %v982 = vmax.f32 %v948, 0.0
        %v983 = vmax.f32 %v953, 0.0
        %v984 = vmax.f32 %v958, 0.0
        %v985 = vmax.f32 %v963, 0.0
        %v986 = vmax.f32 %v968, 0.0
        %v987 = vmax.f32 %v973, 0.0
        %v988 = vmax.f32 %v978, 0.0
        %v989 = vld [vmem:[%s7] sm:$0xff]
        %v990 = vld [vmem:[%s7 + $0x8] sm:$0xff]
        %v991 = vld [vmem:[%s7 + $0x10] sm:$0xff]
        %v992 = vld [vmem:[%s7 + $0x18] sm:$0xff]
        %v993 = vld [vmem:[%s7 + $0x20] sm:$0xff]
        %v994 = vld [vmem:[%s7 + $0x28] sm:$0xff]
        %v995 = vld [vmem:[%s7 + $0x30] sm:$0xff]
        %v996 = vld [vmem:[%s7 + $0x38] sm:$0xff]
        %v997 = vld [vmem:[%s7 + $0x40] sm:$0xff]
        %v998 = vld [vmem:[%s7 + $0x48] sm:$0xff]
        %v999 = vld [vmem:[%s7 + $0x50] sm:$0xff]
        %v1000 = vld [vmem:[%s7 + $0x58] sm:$0xff]
        %v1001 = vld [vmem:[%s7 + $0x60] sm:$0xff]
        %v1002 = vld [vmem:[%s7 + $0x68] sm:$0xff]
        %v1003 = vld [vmem:[%s7 + $0x70] sm:$0xff]
        %v1004 = vld [vmem:[%s7 + $0x78] sm:$0xff]
        %v1005 = vld [vmem:[%s8] sm:$0x1]
        %v1007 = vlaneseq
        %v1008 = vshrl.u32 %v1007, 7
        %v1009 = vsub.s32 0, %v1008
        %v1010 = vrot.slane %v1005, %v1009
        %1012 = vmatprep.subr.mxu0 0.0
        %1013 = vmatpush1.msra.mxu0 %v989
        %1014 = vmatprep.subr.mxu0 0.0
        %1015 = vmatpush1.msra.mxu0 %v990
        %1016 = vmatprep.subr.mxu0 0.0
        %1017 = vmatpush1.msra.mxu0 %v991
        %1018 = vmatprep.subr.mxu0 0.0
        %1019 = vmatpush1.msra.mxu0 %v992
        %1020 = vmatprep.subr.mxu0 0.0
        %1021 = vmatpush1.msra.mxu0 %v993
        %1022 = vmatprep.subr.mxu0 0.0
        %1023 = vmatpush1.msra.mxu0 %v994
        %1024 = vmatprep.subr.mxu0 0.0
        %1025 = vmatpush1.msra.mxu0 %v995
        %1026 = vmatprep.subr.mxu0 0.0
        %1027 = vmatpush1.msra.mxu0 %v996
        %1028 = vmatprep.subr.mxu0 0.0
        %1029 = vmatpush1.msra.mxu0 %v997
        %1030 = vmatprep.subr.mxu0 0.0
        %1031 = vmatpush1.msra.mxu0 %v998
        %1032 = vmatprep.subr.mxu0 0.0
        %1033 = vmatpush1.msra.mxu0 %v999
        %1034 = vmatprep.subr.mxu0 0.0
        %1035 = vmatpush1.msra.mxu0 %v1000
        %1036 = vmatprep.subr.mxu0 0.0
        %1037 = vmatpush1.msra.mxu0 %v1001
        %1038 = vmatprep.subr.mxu0 0.0
        %1039 = vmatpush1.msra.mxu0 %v1002
        %1040 = vmatprep.subr.mxu0 0.0
        %1041 = vmatpush1.msra.mxu0 %v1003
        %1042 = vmatprep.subr.mxu0 0.0
        %1043 = vmatpush1.msra.mxu0 %v1004
        %1044 = vmatprep.subr.mxu0 0.0
        %1045 = vmatpush1.msra.mxu0 0.0
        %1046 = vmatprep.subr.mxu0 0.0
        %1047 = vmatpush1.msra.mxu0 0.0
        %1048 = vmatprep.subr.mxu0 0.0
        %1049 = vmatpush1.msra.mxu0 0.0
        %1050 = vmatprep.subr.mxu0 0.0
        %1051 = vmatpush1.msra.mxu0 0.0
        %1052 = vmatprep.subr.mxu0 0.0
        %1053 = vmatpush1.msra.mxu0 0.0
        %1054 = vmatprep.subr.mxu0 0.0
        %1055 = vmatpush1.msra.mxu0 0.0
        %1056 = vmatprep.subr.mxu0 0.0
        %1057 = vmatpush1.msra.mxu0 0.0
        %1058 = vmatprep.subr.mxu0 0.0
        %1059 = vmatpush1.msra.mxu0 0.0
        %1060 = vmatprep.subr.mxu0 0.0
        %1061 = vmatpush1.msra.mxu0 0.0
        %1062 = vmatprep.subr.mxu0 0.0
        %1063 = vmatpush1.msra.mxu0 0.0
        %1064 = vmatprep.subr.mxu0 0.0
        %1065 = vmatpush1.msra.mxu0 0.0
        %1066 = vmatprep.subr.mxu0 0.0
        %1067 = vmatpush1.msra.mxu0 0.0
        %1068 = vmatprep.subr.mxu0 0.0
        %1069 = vmatpush1.msra.mxu0 0.0
        %1070 = vmatprep.subr.mxu0 0.0
        %1071 = vmatpush1.msra.mxu0 0.0
        %1072 = vmatprep.subr.mxu0 0.0
        %1073 = vmatpush1.msra.mxu0 0.0
        %1074 = vmatprep.subr.mxu0 0.0
        %1075 = vmatpush1.msra.mxu0 0.0
        %1076 = vmatprep.mubr.f32.mxu0 0.0
        %1077 = vmatmul.mubr.f32.gmra.mrb[0].mxu0 %v981
        %v1078 = vpop.f32.mrb[0].mxu0
        %v1079 = vadd.f32 %v1010, %v1078
        %v1080 = vpop.f32.mrb[0].mxu0
        %1081 = vmatprep.mubr.f32.mxu0 0.0
        %1082 = vmatmul.mubr.f32.gmra.mrb[0].mxu0 %v982
        %v1083 = vpop.f32.mrb[0].mxu0
        %v1084 = vadd.f32 %v1010, %v1083
        %v1085 = vpop.f32.mrb[0].mxu0
        %1086 = vmatprep.mubr.f32.mxu0 0.0
        %1087 = vmatmul.mubr.f32.gmra.mrb[0].mxu0 %v983
        %v1088 = vpop.f32.mrb[0].mxu0
        %v1089 = vadd.f32 %v1010, %v1088
        %v1090 = vpop.f32.mrb[0].mxu0
        %1091 = vmatprep.mubr.f32.mxu0 0.0
        %1092 = vmatmul.mubr.f32.gmra.mrb[0].mxu0 %v984
        %v1093 = vpop.f32.mrb[0].mxu0
        %v1094 = vadd.f32 %v1010, %v1093
        %v1095 = vpop.f32.mrb[0].mxu0
        %1096 = vmatprep.mubr.f32.mxu0 0.0
        %1097 = vmatmul.mubr.f32.gmra.mrb[0].mxu0 %v985
        %v1098 = vpop.f32.mrb[0].mxu0
        %v1099 = vadd.f32 %v1010, %v1098
        %v1100 = vpop.f32.mrb[0].mxu0
        %1101 = vmatprep.mubr.f32.mxu0 0.0
        %1102 = vmatmul.mubr.f32.gmra.mrb[0].mxu0 %v986
        %v1103 = vpop.f32.mrb[0].mxu0
        %v1104 = vadd.f32 %v1010, %v1103
        %v1105 = vpop.f32.mrb[0].mxu0
        %1106 = vmatprep.mubr.f32.mxu0 0.0
        %1107 = vmatmul.mubr.f32.gmra.mrb[0].mxu0 %v987
        %v1108 = vpop.f32.mrb[0].mxu0
        %v1109 = vadd.f32 %v1010, %v1108
        %v1110 = vpop.f32.mrb[0].mxu0
        %1111 = vmatprep.mubr.f32.mxu0 0.0
        %1112 = vmatmul.mubr.f32.gmra.mrb[0].mxu0 %v988
        %v1113 = vpop.f32.mrb[0].mxu0
        %v1114 = vadd.f32 %v1010, %v1113
        %v1115 = vpop.f32.mrb[0].mxu0
        %1116 = vdwg.mxu0
        %vm1117 = vcmask 80896
        %v1118 = vsel %vm1117, %v1079, -inf
        %1119 = vmax.xlane.f32.xlu0 %v1118
        %v1120 = vpop.xlane.xlu0 %1119
        %v1121 = vsel %vm1117, %v1084, -inf
        %1122 = vmax.xlane.f32.xlu0 %v1121
        %v1123 = vpop.xlane.xlu0 %1122
        %v1124 = vsel %vm1117, %v1089, -inf
        %1125 = vmax.xlane.f32.xlu0 %v1124
        %v1126 = vpop.xlane.xlu0 %1125
        %v1127 = vsel %vm1117, %v1094, -inf
        %1128 = vmax.xlane.f32.xlu0 %v1127
        %v1129 = vpop.xlane.xlu0 %1128
        %v1130 = vsel %vm1117, %v1099, -inf
        %1131 = vmax.xlane.f32.xlu0 %v1130
        %v1132 = vpop.xlane.xlu0 %1131
        %v1133 = vsel %vm1117, %v1104, -inf
        %1134 = vmax.xlane.f32.xlu0 %v1133
        %v1135 = vpop.xlane.xlu0 %1134
        %v1136 = vsel %vm1117, %v1109, -inf
        %1137 = vmax.xlane.f32.xlu0 %v1136
        %v1138 = vpop.xlane.xlu0 %1137
        %v1139 = vsel %vm1117, %v1114, -inf
        %1140 = vmax.xlane.f32.xlu0 %v1139
        %v1141 = vpop.xlane.xlu0 %1140
        %v1142 = vsub.f32 %v1079, %v1120
        %v1143 = vsub.f32 %v1084, %v1123
        %v1144 = vsub.f32 %v1089, %v1126
        %v1145 = vsub.f32 %v1094, %v1129
        %v1146 = vsub.f32 %v1099, %v1132
        %v1147 = vsub.f32 %v1104, %v1135
        %v1148 = vsub.f32 %v1109, %v1138
        %v1149 = vsub.f32 %v1114, %v1141
        %v1150 = vmul.f32 %v1142, 1.442695
        %v1151 = vpow.pop %v1150
        %v1152 = vmul.f32 %v1143, 1.442695
        %v1153 = vpow.pop %v1152
        %v1154 = vmul.f32 %v1144, 1.442695
        %v1155 = vpow.pop %v1154
        %v1156 = vmul.f32 %v1145, 1.442695
        %v1157 = vpow.pop %v1156
        %v1158 = vmul.f32 %v1146, 1.442695
        %v1159 = vpow.pop %v1158
        %v1160 = vmul.f32 %v1147, 1.442695
        %v1161 = vpow.pop %v1160
        %v1162 = vmul.f32 %v1148, 1.442695
        %v1163 = vpow.pop %v1162
        %v1164 = vmul.f32 %v1149, 1.442695
        %v1165 = vpow.pop %v1164
        %v1166 = vsel %vm1117, %v1151, 0.0
        %1167 = vadd.xlane.f32.xlu0 %v1166
        %v1168 = vpop.xlane.xlu0 %1167
        %v1169 = vsel %vm1117, %v1153, 0.0
        %1170 = vadd.xlane.f32.xlu0 %v1169
        %v1171 = vpop.xlane.xlu0 %1170
        %v1172 = vsel %vm1117, %v1155, 0.0
        %1173 = vadd.xlane.f32.xlu0 %v1172
        %v1174 = vpop.xlane.xlu0 %1173
        %v1175 = vsel %vm1117, %v1157, 0.0
        %1176 = vadd.xlane.f32.xlu0 %v1175
        %v1177 = vpop.xlane.xlu0 %1176
        %v1178 = vsel %vm1117, %v1159, 0.0
        %1179 = vadd.xlane.f32.xlu0 %v1178
        %v1180 = vpop.xlane.xlu0 %1179
        %v1181 = vsel %vm1117, %v1161, 0.0
        %1182 = vadd.xlane.f32.xlu0 %v1181
        %v1183 = vpop.xlane.xlu0 %1182
        %v1184 = vsel %vm1117, %v1163, 0.0
        %1185 = vadd.xlane.f32.xlu0 %v1184
        %v1186 = vpop.xlane.xlu0 %1185
        %v1187 = vsel %vm1117, %v1165, 0.0
        %1188 = vadd.xlane.f32.xlu0 %v1187
        %v1189 = vpop.xlane.xlu0 %1188
        %v1190 = vrcp.pop %v1168
        %v1191 = vrcp.pop %v1171
        %v1192 = vrcp.pop %v1174
        %v1193 = vrcp.pop %v1177
        %v1194 = vrcp.pop %v1180
        %v1195 = vrcp.pop %v1183
        %v1196 = vrcp.pop %v1186
        %v1197 = vrcp.pop %v1189
        %v1198 = vmul.f32 %v1151, %v1190
        %v1199 = vmul.f32 %v1153, %v1191
        %v1200 = vmul.f32 %v1155, %v1192
        %v1201 = vmul.f32 %v1157, %v1193
        %v1202 = vmul.f32 %v1159, %v1194
        %v1203 = vmul.f32 %v1161, %v1195
        %v1204 = vmul.f32 %v1163, %v1196
        %v1205 = vmul.f32 %v1165, %v1197
        %1206 = vst.msk [vmem:[%s383] sm:$0xff] %vm1117, %v1198
        %1207 = vst.msk [vmem:[%s383 + $0x8] sm:$0xff] %vm1117, %v1199
        %1208 = vst.msk [vmem:[%s383 + $0x10] sm:$0xff] %vm1117, %v1200
        %1209 = vst.msk [vmem:[%s383 + $0x18] sm:$0xff] %vm1117, %v1201
        %1210 = vst.msk [vmem:[%s383 + $0x20] sm:$0xff] %vm1117, %v1202
        %1211 = vst.msk [vmem:[%s383 + $0x28] sm:$0xff] %vm1117, %v1203
        %1212 = vst.msk [vmem:[%s383 + $0x30] sm:$0xff] %vm1117, %v1204
        %1213 = vst.msk [vmem:[%s383 + $0x38] sm:$0xff] %vm1117, %v1205
        %s1214 = sand.u32 %s226, 1
        %s1215 = sand.u32 %s226, 1
        %s1216 = smul.addr %s1215, 64
        %s1217 = scalar_lea.vmem [#allocation7], %s1216
        // Predicated region
        $region69: #{tpu_custom_call.1} parent=55 // pred_check
          %p1218 = pneg %p236
        $region70: #{tpu_custom_call.1} parent=55 // pred_check_branch
          %1220 = sbr.rel (%p1218) target = $region72
        $region71: #{tpu_custom_call.1} parent=55 // pred_region
          %s1221 = smul.u32 8, %s24
          %s1222 = ssub.s32 25, %s1221
          %p1223 = scmp.lt.s32.totalorder %s1222, 8
          %s1224 = scalar_select %p1223, %s1222, 8
          %s1225 = smul.u32 128, %s1224
          %p1226 = scmp.ne.s32.totalorder 0, %s1225
          %s1227 = smul.addr %s1221, 8
          %s1228 = scalar_lea.vmem %s9, %s1227
          // Predicated region
          $region73: #{tpu_custom_call.1} parent=71 // pred_check
            %p1229 = pneg %p1226
          $region74: #{tpu_custom_call.1} parent=71 // pred_check_branch
            %1231 = sbr.rel (%p1229) target = $region76
          $region75: #{tpu_custom_call.1} parent=71 // pred_region
            // Predicated region
            $region77: #{tpu_custom_call.1} parent=75 // pred_check
              _
            $region78: #{tpu_custom_call.1} parent=75 // pred_check_branch
              %1233 = sbr.rel (0) target = $region80
            $region79: #{tpu_custom_call.1} parent=75 // pred_region
              // Predicated region
              $region99: #{tpu_custom_call.1} parent=79 // pred_check
                _
              $region100: #{tpu_custom_call.1} parent=79 // pred_check_branch
                %1296 = sbr.rel (0) target = $region102
              $region101: #{tpu_custom_call.1} parent=79 // pred_region
                %s1297 = sshrl.u32 %s1224, 3
                // While loop
                $region103: #{tpu_custom_call.1} parent=101 // loop_pre_header
                  _
                $region104: #{tpu_custom_call.1} parent=101 // loop_header
                  %s1299 = sphi 0, %s1301
                  %p1300 = scmp.ge.s32.totalorder %s1299, %s1297
                  %s1304 = sphi 0, %s1325
                  %s1305 = sphi %s1217, %s1328
                  %s1306 = sphi %s1228, %s1329
                $region105: #{tpu_custom_call.1} parent=101 // loop_header_branch
                  %1303 = sbr.rel (%p1300) target = $region109
                $region106: #{tpu_custom_call.1} parent=101 // loop_body
                  %v1307 = vld [vmem:[%s1305] sm:$0xff]
                  %1308 = vst [vmem:[%s1306] sm:$0xff] %v1307
                  %v1309 = vld [vmem:[%s1305 + $0x8] sm:$0xff]
                  %1310 = vst [vmem:[%s1306 + $0x8] sm:$0xff] %v1309
                  %v1311 = vld [vmem:[%s1305 + $0x10] sm:$0xff]
                  %1312 = vst [vmem:[%s1306 + $0x10] sm:$0xff] %v1311
                  %v1313 = vld [vmem:[%s1305 + $0x18] sm:$0xff]
                  %1314 = vst [vmem:[%s1306 + $0x18] sm:$0xff] %v1313
                  %v1315 = vld [vmem:[%s1305 + $0x20] sm:$0xff]
                  %1316 = vst [vmem:[%s1306 + $0x20] sm:$0xff] %v1315
                  %v1317 = vld [vmem:[%s1305 + $0x28] sm:$0xff]
                  %1318 = vst [vmem:[%s1306 + $0x28] sm:$0xff] %v1317
                  %v1319 = vld [vmem:[%s1305 + $0x30] sm:$0xff]
                  %1320 = vst [vmem:[%s1306 + $0x30] sm:$0xff] %v1319
                  %v1321 = vld [vmem:[%s1305 + $0x38] sm:$0xff]
                  %1322 = vst [vmem:[%s1306 + $0x38] sm:$0xff] %v1321
                  %s1323 = sadd.s32 1, %s1304
                  %p1324 = scmp.ge.s32.totalorder %s1323, %s1297
                  %s1325 = scalar_select %p1324, 0, %s1323
                  %s1326 = smul.u32 %s1325, 64
                  %s1327 = smul.u32 %s1325, 64
                  %s1328 = scalar_lea.vmem %s1217, %s1326 [#allocation7]
                  %s1329 = scalar_lea.vmem %s1228, %s1327
                $region107: #{tpu_custom_call.1} parent=101 // loop_footer
                  %s1301 = sadd.s32 %s1299, 1
                $region108: #{tpu_custom_call.1} parent=101 // loop_footer_branch
                  %1298 = sbr.rel target = $region104
                $region109: #{tpu_custom_call.1} parent=101 // loop_exit
                  _
                %s1330 = sshrl.u32 %s1224, 3
                %s1331 = sand.u32 %s1224, 7
                %s1332 = smul.u32 %s1330, 8
                %s1333 = smul.u32 8, %s1332
                %s1334 = scalar_lea.vmem %s1217, %s1333 [#allocation7]
                %s1335 = smul.u32 8, %s1332
                %s1336 = scalar_lea.vmem %s1228, %s1335
                // While loop
                $region110: #{tpu_custom_call.1} parent=101 // loop_pre_header
                  _
                $region111: #{tpu_custom_call.1} parent=101 // loop_header
                  %s1338 = sphi 0, %s1340
                  %p1339 = scmp.ge.s32.totalorder %s1338, %s1331
                  %s1343 = sphi 0, %s1350
                  %s1344 = sphi %s1334, %s1353
                  %s1345 = sphi %s1336, %s1354
                $region112: #{tpu_custom_call.1} parent=101 // loop_header_branch
                  %1342 = sbr.rel (%p1339) target = $region116
                $region113: #{tpu_custom_call.1} parent=101 // loop_body
                  %v1346 = vld [vmem:[%s1344] sm:$0xff]
                  %1347 = vst [vmem:[%s1345] sm:$0xff] %v1346
                  %s1348 = sadd.s32 1, %s1343
                  %p1349 = scmp.ge.s32.totalorder %s1348, %s1331
                  %s1350 = scalar_select %p1349, 0, %s1348
                  %s1351 = smul.u32 %s1350, 8
                  %s1352 = smul.u32 %s1350, 8
                  %s1353 = scalar_lea.vmem %s1334, %s1351 [#allocation7]
                  %s1354 = scalar_lea.vmem %s1336, %s1352
                $region114: #{tpu_custom_call.1} parent=101 // loop_footer
                  %s1340 = sadd.s32 %s1338, 1
                $region115: #{tpu_custom_call.1} parent=101 // loop_footer_branch
                  %1337 = sbr.rel target = $region111
                $region116: #{tpu_custom_call.1} parent=101 // loop_exit
                  _
              $region102: #{tpu_custom_call.1} parent=79 // pred_fallthru
                _
              // Predicated region
              $region117: #{tpu_custom_call.1} parent=79 // pred_check
                _
              $region118: #{tpu_custom_call.1} parent=79 // pred_check_branch
                %1356 = sbr.rel target = $region120
              $region119: #{tpu_custom_call.1} parent=79 // pred_region
                _
              $region120: #{tpu_custom_call.1} parent=79 // pred_fallthru
                _
            $region80: #{tpu_custom_call.1} parent=75 // pred_fallthru
              _
            // Predicated region
            $region81: #{tpu_custom_call.1} parent=75 // pred_check
              _
            $region82: #{tpu_custom_call.1} parent=75 // pred_check_branch
              %1235 = sbr.rel target = $region84
            $region83: #{tpu_custom_call.1} parent=75 // pred_region
              %s1237 = sshrl.u32 %s1224, 3
              // While loop
              $region85: #{tpu_custom_call.1} parent=83 // loop_pre_header
                _
              $region86: #{tpu_custom_call.1} parent=83 // loop_header
                %s1239 = sphi 0, %s1241
                %p1240 = scmp.ge.s32.totalorder %s1239, %s1237
                %s1244 = sphi 0, %s1265
                %s1245 = sphi %s1217, %s1268
                %s1246 = sphi %s1228, %s1269
              $region87: #{tpu_custom_call.1} parent=83 // loop_header_branch
                %1243 = sbr.rel (%p1240) target = $region91
              $region88: #{tpu_custom_call.1} parent=83 // loop_body
                %v1247 = vld [vmem:[%s1245] sm:$0xff]
                %1248 = vst [vmem:[%s1246] sm:$0xff] %v1247
                %v1249 = vld [vmem:[%s1245 + $0x8] sm:$0xff]
                %1250 = vst [vmem:[%s1246 + $0x8] sm:$0xff] %v1249
                %v1251 = vld [vmem:[%s1245 + $0x10] sm:$0xff]
                %1252 = vst [vmem:[%s1246 + $0x10] sm:$0xff] %v1251
                %v1253 = vld [vmem:[%s1245 + $0x18] sm:$0xff]
                %1254 = vst [vmem:[%s1246 + $0x18] sm:$0xff] %v1253
                %v1255 = vld [vmem:[%s1245 + $0x20] sm:$0xff]
                %1256 = vst [vmem:[%s1246 + $0x20] sm:$0xff] %v1255
                %v1257 = vld [vmem:[%s1245 + $0x28] sm:$0xff]
                %1258 = vst [vmem:[%s1246 + $0x28] sm:$0xff] %v1257
                %v1259 = vld [vmem:[%s1245 + $0x30] sm:$0xff]
                %1260 = vst [vmem:[%s1246 + $0x30] sm:$0xff] %v1259
                %v1261 = vld [vmem:[%s1245 + $0x38] sm:$0xff]
                %1262 = vst [vmem:[%s1246 + $0x38] sm:$0xff] %v1261
                %s1263 = sadd.s32 1, %s1244
                %p1264 = scmp.ge.s32.totalorder %s1263, %s1237
                %s1265 = scalar_select %p1264, 0, %s1263
                %s1266 = smul.u32 %s1265, 64
                %s1267 = smul.u32 %s1265, 64
                %s1268 = scalar_lea.vmem %s1217, %s1266 [#allocation7]
                %s1269 = scalar_lea.vmem %s1228, %s1267
              $region89: #{tpu_custom_call.1} parent=83 // loop_footer
                %s1241 = sadd.s32 %s1239, 1
              $region90: #{tpu_custom_call.1} parent=83 // loop_footer_branch
                %1238 = sbr.rel target = $region86
              $region91: #{tpu_custom_call.1} parent=83 // loop_exit
                _
              %s1270 = sshrl.u32 %s1224, 3
              %s1271 = sand.u32 %s1224, 7
              %s1272 = smul.u32 %s1270, 8
              %s1273 = smul.u32 8, %s1272
              %s1274 = scalar_lea.vmem %s1217, %s1273 [#allocation7]
              %s1275 = smul.u32 8, %s1272
              %s1276 = scalar_lea.vmem %s1228, %s1275
              // While loop
              $region92: #{tpu_custom_call.1} parent=83 // loop_pre_header
                _
              $region93: #{tpu_custom_call.1} parent=83 // loop_header
                %s1278 = sphi 0, %s1280
                %p1279 = scmp.ge.s32.totalorder %s1278, %s1271
                %s1283 = sphi 0, %s1290
                %s1284 = sphi %s1274, %s1293
                %s1285 = sphi %s1276, %s1294
              $region94: #{tpu_custom_call.1} parent=83 // loop_header_branch
                %1282 = sbr.rel (%p1279) target = $region98
              $region95: #{tpu_custom_call.1} parent=83 // loop_body
                %v1286 = vld [vmem:[%s1284] sm:$0xff]
                %1287 = vst [vmem:[%s1285] sm:$0xff] %v1286
                %s1288 = sadd.s32 1, %s1283
                %p1289 = scmp.ge.s32.totalorder %s1288, %s1271
                %s1290 = scalar_select %p1289, 0, %s1288
                %s1291 = smul.u32 %s1290, 8
                %s1292 = smul.u32 %s1290, 8
                %s1293 = scalar_lea.vmem %s1274, %s1291 [#allocation7]
                %s1294 = scalar_lea.vmem %s1276, %s1292
              $region96: #{tpu_custom_call.1} parent=83 // loop_footer
                %s1280 = sadd.s32 %s1278, 1
              $region97: #{tpu_custom_call.1} parent=83 // loop_footer_branch
                %1277 = sbr.rel target = $region93
              $region98: #{tpu_custom_call.1} parent=83 // loop_exit
                _
            $region84: #{tpu_custom_call.1} parent=75 // pred_fallthru
              _
          $region76: #{tpu_custom_call.1} parent=71 // pred_fallthru
            _
          %1357 = vnop
        $region72: #{tpu_custom_call.1} parent=55 // pred_fallthru
          _
      $region56: #{tpu_custom_call.1} parent=5 // pred_fallthru
        _
      %p1358 = scmp.le.s32.totalorder 2, %s19
      // Predicated region
      $region121: #{tpu_custom_call.1} parent=5 // pred_check
        %p1359 = pneg %p1358
      $region122: #{tpu_custom_call.1} parent=5 // pred_check_branch
        %1361 = sbr.rel (%p1359) target = $region124
      $region123: #{tpu_custom_call.1} parent=5 // pred_region
        %s1362 = ssub.s32 %s19, 2
        // Predicated region
        $region125: #{tpu_custom_call.1} parent=123 // pred_check
          %p1363 = pneg %p242
        $region126: #{tpu_custom_call.1} parent=123 // pred_check_branch
          %1365 = sbr.rel (%p1363) target = $region128
        $region127: #{tpu_custom_call.1} parent=123 // pred_region
          %s1366 = sand.u32 %s227, 1
          %s1367 = sand.u32 %s227, 1
          %s1368 = smul.addr %s1367, 64
          %s1369 = scalar_lea.vmem [#allocation7], %s1368
        $region128: #{tpu_custom_call.1} parent=123 // pred_fallthru
          _
      $region124: #{tpu_custom_call.1} parent=5 // pred_fallthru
        _
    $region6: #{tpu_custom_call.1} parent=1 // loop_footer
      %s23 = sadd.s32 1, %s19
    $region7: #{tpu_custom_call.1} parent=1 // loop_footer_branch
      %18 = sbr.rel target = $region3
    $region8: #{tpu_custom_call.1} parent=1 // loop_exit
      _
    %1370 = vsyncpa [#allocation3], 1
    %s1371 = scalar_lea.sflag [#allocation3], 1
    %1372 = vsyncpa %s1371, 1
    %1373 = vsyncpa [#allocation5], 1

</llo_original>
